<compile_context>
chip_gen: v5e
topology: v5e:2x2
jax: 0.10.0
libtpu: 0.0.40
codegen_flags: <defaults>
</compile_context>

<pallas_src>
import functools

import numpy as np

import jax
import jax.numpy as jnp
from jax.experimental import pallas as pl
from jax.experimental.pallas import tpu as pltpu

LEAKY_SLOPE = 0.2
BN_EPS = 1e-5
LANE = 128          # TPU lane width
SUBLANE_BF16 = 16   # bf16 sublane pack


def _leaky_relu(x):
    return jnp.where(x >= 0, x, LEAKY_SLOPE * x)


# ---------------------------------------------------------------------------
# Fused encoder kernel: 3 MXU matmuls + scale/bias + LeakyReLU.
# Weights for layers 1/2 arrive as int8 and are dequantized to bf16 in vregs;
# per-column scales live in aff_ref row 0, biases in row 1 (lane-aligned).
# Intermediates never leave VMEM/registers.
# ---------------------------------------------------------------------------
def _encoder_kernel(x_ref, w1_ref, w2_ref, w3_ref, aff_ref, o_ref):
    n1 = w1_ref.shape[1]
    n2 = w2_ref.shape[1]
    n3 = w3_ref.shape[1]

    # layer 'input': conv(4->8, k4 s2 p1) + LeakyReLU   (dense 1024 -> 512)
    h = jnp.dot(x_ref[...], w1_ref[...].astype(jnp.bfloat16),
                preferred_element_type=jnp.float32)
    h = h * aff_ref[0:1, 0:n1] + aff_ref[1:2, 0:n1]
    h = _leaky_relu(h)

    # layer 'pyramid-0': conv(8->16, k4 s2 p1) + BN(eval, folded) + LeakyReLU
    # (dense 512 -> 256)
    h = jnp.dot(h.astype(jnp.bfloat16), w2_ref[...].astype(jnp.bfloat16),
                preferred_element_type=jnp.float32)
    h = h * aff_ref[0:1, n1:n1 + n2] + aff_ref[1:2, n1:n1 + n2]
    h = _leaky_relu(h)

    # layer 'head': conv(16->32, k4 s1 p0)   (dense 256 -> 128 lane-padded, no act)
    h = jnp.dot(h.astype(jnp.bfloat16), w3_ref[...],
                preferred_element_type=jnp.float32)
    o_ref[...] = h + aff_ref[1:2, n1 + n2:n1 + n2 + n3]


def conv_encoder_forward(packed, x_nchw, *, nz_enc):
    """Jitted forward: reshape/pad -> single pallas_call -> slice/reshape (NCHW out)."""
    B = x_nchw.shape[0]
    B_pad = ((B + SUBLANE_BF16 - 1) // SUBLANE_BF16) * SUBLANE_BF16

    xf = x_nchw.reshape(B, -1)            # NCHW flat, matches w1 row order
    if B_pad != B:
        xf = jnp.pad(xf, ((0, B_pad - B), (0, 0)))
    xf = xf.astype(jnp.bfloat16)          # halves activation DMA; matmul is bf16 anyway

    k1, n1 = packed["w1"].shape
    k2, n2 = packed["w2"].shape
    k3, n3 = packed["w3"].shape

    flops = 2 * B_pad * (k1 * n1 + k2 * n2 + k3 * n3)
    bytes_accessed = int(
        xf.size * 2                       # bf16 activations in
        + packed["w1"].size * 1           # int8
        + packed["w2"].size * 1           # int8
        + packed["w3"].size * 2           # bf16
        + packed["aff"].size * 4          # f32 scales+biases
        + B_pad * n3 * 4)                 # f32 out

    vmem = pl.BlockSpec(memory_space=pltpu.MemorySpace.VMEM)
    out = pl.pallas_call(
        _encoder_kernel,
        out_shape=jax.ShapeDtypeStruct((B_pad, n3), jnp.float32),
        in_specs=[vmem, vmem, vmem, vmem, vmem],
        out_specs=vmem,
        cost_estimate=pl.CostEstimate(flops=flops, transcendentals=0,
                                      bytes_accessed=bytes_accessed),
    )(xf, packed["w1"], packed["w2"], packed["w3"], packed["aff"])

    return out[:B, :nz_enc].reshape(B, nz_enc, 1, 1)   # back to NCHW (1x1 spatial)


# ---------------------------------------------------------------------------
# One-time parameter preparation (hoisted out of the forward path).
# Lowers each Conv2d on its fixed spatial extent to a dense matrix + bias,
# folds eval-mode BatchNorm, quantizes the two big matrices to int8, packs
# scales/biases into one lane-aligned array, lane-pads the head to 128 cols.
# ---------------------------------------------------------------------------
def _conv_to_dense(w, b, h_in, w_in, stride, pad, in_order):
    """out_flat[(ho*Wo+wo)*Cout+co] = in_flat @ Wd + bd  (per sample).

    in_order: 'chw' -> input flattened as (ci, hi, wi)  (raw NCHW image)
              'hwc' -> input flattened as (hi, wi, ci)  (previous layer output)
    """
    w = np.asarray(w, np.float32)
    b = np.asarray(b, np.float32)
    c_out, c_in, k_h, k_w = w.shape
    h_out = (h_in + 2 * pad - k_h) // stride + 1
    w_out = (w_in + 2 * pad - k_w) // stride + 1

    wd = np.zeros((c_in * h_in * w_in, h_out * w_out * c_out), np.float32)
    ci = np.arange(c_in)
    for ho in range(h_out):
        for wo in range(w_out):
            col0 = (ho * w_out + wo) * c_out
            for i in range(k_h):
                hi = ho * stride + i - pad
                if hi < 0 or hi >= h_in:
                    continue
                for j in range(k_w):
                    wi = wo * stride + j - pad
                    if wi < 0 or wi >= w_in:
                        continue
                    if in_order == "chw":
                        rows = (ci * h_in + hi) * w_in + wi
                    else:  # 'hwc'
                        rows = (hi * w_in + wi) * c_in + ci
                    wd[rows, col0:col0 + c_out] = w[:, :, i, j].T   # (Cin, Cout)
    bd = np.tile(b, h_out * w_out)
    return wd, bd, (h_out, w_out)


def _quantize_cols_int8(w):
    """Symmetric per-column int8 quantization (structural zeros stay exact)."""
    amax = np.maximum(np.max(np.abs(w), axis=0), 1e-12)
    scale = (amax / 127.0).astype(np.float32)
    q = np.clip(np.rint(w / scale[None, :]), -127, 127).astype(np.int8)
    return q, scale


def prepare_params(params, img_sz):
    p1, p2, p3 = params["input"], params["pyramid0"], params["head"]

    # 'input' block
    w1d, b1d, (h1, w1s) = _conv_to_dense(p1["w"], p1["b"], img_sz, img_sz,
                                         stride=2, pad=1, in_order="chw")

    # 'pyramid-0' block: fold eval-mode BN into the conv weight/bias first.
    # TODO(synk): training-mode BatchNorm (batch statistics) not implemented;
    # eval-mode running stats are folded into the conv weights here.
    mean, var, gamma, beta = (np.asarray(t, np.float32) for t in p2["bn"])
    bscale = gamma / np.sqrt(var + BN_EPS)
    w2f = np.asarray(p2["w"], np.float32) * bscale[:, None, None, None]
    b2f = (np.asarray(p2["b"], np.float32) - mean) * bscale + beta
    w2d, b2d, (h2, w2s) = _conv_to_dense(w2f, b2f, h1, w1s,
                                         stride=2, pad=1, in_order="hwc")

    # 'head'
    w3d, b3d, (h3, w3s) = _conv_to_dense(p3["w"], p3["b"], h2, w2s,
                                         stride=1, pad=0, in_order="hwc")
    assert (h3, w3s) == (1, 1), (h3, w3s)
    nz_enc = int(b3d.shape[0])

    # Lane-pad the head to a multiple of 128 output columns -> unmasked stores.
    n3 = max(LANE, ((nz_enc + LANE - 1) // LANE) * LANE)
    w3p = np.zeros((w3d.shape[0], n3), np.float32)
    w3p[:, :nz_enc] = w3d
    b3p = np.zeros((n3,), np.float32)
    b3p[:nz_enc] = b3d

    # int8 storage for the two big dense matrices (halves their HBM DMA).
    w1q, s1 = _quantize_cols_int8(w1d)
    w2q, s2 = _quantize_cols_int8(w2d)

    # Pack dequant scales (row 0) and biases (row 1) into one lane-aligned array.
    n1, n2 = w1d.shape[1], w2d.shape[1]
    aff = np.zeros((2, n1 + n2 + n3), np.float32)
    aff[0, :n1] = s1
    aff[1, :n1] = b1d
    aff[0, n1:n1 + n2] = s2
    aff[1, n1:n1 + n2] = b2d
    aff[0, n1 + n2:] = 1.0          # unused (head is not quantized)
    aff[1, n1 + n2:] = b3p

    packed = {
        "w1": jnp.asarray(w1q),                    # int8 (1024, 512)
        "w2": jnp.asarray(w2q),                    # int8 (512, 256)
        "w3": jnp.asarray(w3p, jnp.bfloat16),      # bf16 (256, 128)
        "aff": jnp.asarray(aff, jnp.float32),      # f32  (2, 896)
    }
    return packed, nz_enc


# ---------------------------------------------------------------------------
# Parameter init (deterministic, mirrors init_weights_xavier: xavier-uniform
# conv weights, zero biases; BatchNorm gamma=1, beta=0, running stats 0/1).
# ---------------------------------------------------------------------------
def xavier_conv(key, cout, cin, kh, kw):
    fan_in = cin * kh * kw
    fan_out = cout * kh * kw
    bound = float(np.sqrt(6.0 / (fan_in + fan_out)))
    return jax.random.uniform(key, (cout, cin, kh, kw), jnp.float32, -bound, bound)


def build_params(key, input_nc, ngf, nz_enc):
    k0, k1, k2 = jax.random.split(key, 3)
    return {
        "input": {"w": xavier_conv(k0, ngf, input_nc, 4, 4),
                  "b": jnp.zeros((ngf,), jnp.float32)},
        "pyramid0": {"w": xavier_conv(k1, 2 * ngf, ngf, 4, 4),
                     "b": jnp.zeros((2 * ngf,), jnp.float32),
                     "bn": (jnp.zeros((2 * ngf,), jnp.float32),   # running_mean
                            jnp.ones((2 * ngf,), jnp.float32),    # running_var
                            jnp.ones((2 * ngf,), jnp.float32),    # gamma
                            jnp.zeros((2 * ngf,), jnp.float32))}, # beta
        "head": {"w": xavier_conv(k2, nz_enc, 2 * ngf, 4, 4),
                 "b": jnp.zeros((nz_enc,), jnp.float32)},
    }


# ---------------------------------------------------------------------------
# Pure-JAX reference (PyTorch semantics) for a correctness cross-check.
# ---------------------------------------------------------------------------
def _reference_forward(params, x):
    def conv(h, w, b, stride, pad):
        out = jax.lax.conv_general_dilated(
            h, w, window_strides=(stride, stride),
            padding=((pad, pad), (pad, pad)),
            dimension_numbers=("NCHW", "OIHW", "NCHW"))
        return out + b[None, :, None, None]

    def lrelu(t):
        return jnp.where(t >= 0, t, LEAKY_SLOPE * t)

    h = lrelu(conv(x, params["input"]["w"], params["input"]["b"], 2, 1))
    h = conv(h, params["pyramid0"]["w"], params["pyramid0"]["b"], 2, 1)
    mean, var, gamma, beta = params["pyramid0"]["bn"]
    inv = jax.lax.rsqrt(var + BN_EPS)
    h = (h - mean[None, :, None, None]) * (inv * gamma)[None, :, None, None] \
        + beta[None, :, None, None]
    h = lrelu(h)
    h = conv(h, params["head"]["w"], params["head"]["b"], 1, 0)
    return h


if __name__ == "__main__":
    # hp: img_sz=16, input_nc=4, ngf=8, nz_enc=32
    B, input_nc, img_sz = 2, 4, 16
    ngf, nz_enc = 8, 32

    key = jax.random.PRNGKey(0)
    kx, kp = jax.random.split(key)
    x = jax.random.normal(kx, (B, input_nc, img_sz, img_sz), jnp.float32)

    params = build_params(kp, input_nc, ngf, nz_enc)
    packed, nz = prepare_params(params, img_sz)       # one-time prep, outside jit
    assert nz == nz_enc

    fwd = jax.jit(functools.partial(conv_encoder_forward, nz_enc=nz))
    out = jax.block_until_ready(fwd(packed, x))

    assert out.shape == (B, nz_enc, 1, 1), out.shape
    assert out.dtype == jnp.float32
    assert bool(jnp.all(jnp.isfinite(out)))

    # Cross-check against the pure-JAX f32 reference (bf16 matmul operands +
    # int8 weight storage -> loose tolerance; error budget is ~1e-2).
    ref = _reference_forward(params, x)
    max_err = float(jnp.max(jnp.abs(out - ref)))
    assert max_err < 5e-2, f"max abs err {max_err}"

    print("KERNEL_OK")
</pallas_src>

<mosaic_0001>
module attributes {stable_mosaic.version = 11 : i64} {
  func.func @_encoder_kernel(%arg0: memref<16x1024xbf16, #tpu.memory_space<vmem>>, %arg1: memref<1024x512xi8, #tpu.memory_space<vmem>>, %arg2: memref<512x256xi8, #tpu.memory_space<vmem>>, %arg3: memref<256x128xbf16, #tpu.memory_space<vmem>>, %arg4: memref<2x896xf32, #tpu.memory_space<vmem>>, %arg5: memref<16x128xf32, #tpu.memory_space<vmem>>) attributes {dimension_semantics = [], scalar_prefetch = 0 : i64, scratch_operands = 0 : i64, tpu.core_type = #tpu.core_type<tc>} {
    %c0 = arith.constant 0 : index
    %c0_0 = arith.constant 0 : index
    %0 = vector.load %arg0[%c0, %c0_0] : memref<16x1024xbf16, #tpu.memory_space<vmem>>, vector<16x1024xbf16>
    %c0_1 = arith.constant 0 : index
    %c0_2 = arith.constant 0 : index
    %1 = vector.load %arg1[%c0_1, %c0_2] : memref<1024x512xi8, #tpu.memory_space<vmem>>, vector<1024x512xi8>
    %2 = arith.sitofp %1 : vector<1024x512xi8> to vector<1024x512xbf16>
    %cst = arith.constant dense<0.000000e+00> : vector<16x512xf32>
    %3 = tpu.matmul %0, %2, %cst {dimension_numbers = #tpu.dot_dimension_numbers<[1], [0], [0], [1], [0, 0, 1, 1], [], []>} : vector<16x1024xbf16>, vector<1024x512xbf16>, vector<16x512xf32> -> vector<16x512xf32>
    %c0_3 = arith.constant 0 : index
    %c0_4 = arith.constant 0 : index
    %4 = vector.load %arg4[%c0_3, %c0_4] : memref<2x896xf32, #tpu.memory_space<vmem>>, vector<1x512xf32>
    %5 = vector.broadcast %4 : vector<1x512xf32> to vector<16x512xf32>
    %6 = arith.mulf %3, %5 : vector<16x512xf32>
    %c1 = arith.constant 1 : index
    %c0_5 = arith.constant 0 : index
    %7 = vector.load %arg4[%c1, %c0_5] : memref<2x896xf32, #tpu.memory_space<vmem>>, vector<1x512xf32>
    %8 = vector.broadcast %7 : vector<1x512xf32> to vector<16x512xf32>
    %9 = arith.addf %6, %8 : vector<16x512xf32>
    %cst_6 = arith.constant 0.000000e+00 : f32
    %10 = vector.broadcast %cst_6 : f32 to vector<16x512xf32>
    %11 = arith.cmpf oge, %9, %10 : vector<16x512xf32>
    %cst_7 = arith.constant 2.000000e-01 : f32
    %12 = vector.broadcast %cst_7 : f32 to vector<16x512xf32>
    %13 = arith.mulf %12, %9 : vector<16x512xf32>
    %14 = arith.select %11, %9, %13 : vector<16x512xi1>, vector<16x512xf32>
    %15 = arith.truncf %14 : vector<16x512xf32> to vector<16x512xbf16>
    %c0_8 = arith.constant 0 : index
    %c0_9 = arith.constant 0 : index
    %16 = vector.load %arg2[%c0_8, %c0_9] : memref<512x256xi8, #tpu.memory_space<vmem>>, vector<512x256xi8>
    %17 = arith.sitofp %16 : vector<512x256xi8> to vector<512x256xbf16>
    %cst_10 = arith.constant dense<0.000000e+00> : vector<16x256xf32>
    %18 = tpu.matmul %15, %17, %cst_10 {dimension_numbers = #tpu.dot_dimension_numbers<[1], [0], [0], [1], [0, 0, 1, 1], [], []>} : vector<16x512xbf16>, vector<512x256xbf16>, vector<16x256xf32> -> vector<16x256xf32>
    %c0_11 = arith.constant 0 : index
    %c512 = arith.constant 512 : index
    %19 = vector.load %arg4[%c0_11, %c512] : memref<2x896xf32, #tpu.memory_space<vmem>>, vector<1x256xf32>
    %20 = vector.broadcast %19 : vector<1x256xf32> to vector<16x256xf32>
    %21 = arith.mulf %18, %20 : vector<16x256xf32>
    %c1_12 = arith.constant 1 : index
    %c512_13 = arith.constant 512 : index
    %22 = vector.load %arg4[%c1_12, %c512_13] : memref<2x896xf32, #tpu.memory_space<vmem>>, vector<1x256xf32>
    %23 = vector.broadcast %22 : vector<1x256xf32> to vector<16x256xf32>
    %24 = arith.addf %21, %23 : vector<16x256xf32>
    %cst_14 = arith.constant 0.000000e+00 : f32
    %25 = vector.broadcast %cst_14 : f32 to vector<16x256xf32>
    %26 = arith.cmpf oge, %24, %25 : vector<16x256xf32>
    %cst_15 = arith.constant 2.000000e-01 : f32
    %27 = vector.broadcast %cst_15 : f32 to vector<16x256xf32>
    %28 = arith.mulf %27, %24 : vector<16x256xf32>
    %29 = arith.select %26, %24, %28 : vector<16x256xi1>, vector<16x256xf32>
    %30 = arith.truncf %29 : vector<16x256xf32> to vector<16x256xbf16>
    %c0_16 = arith.constant 0 : index
    %c0_17 = arith.constant 0 : index
    %31 = vector.load %arg3[%c0_16, %c0_17] : memref<256x128xbf16, #tpu.memory_space<vmem>>, vector<256x128xbf16>
    %cst_18 = arith.constant dense<0.000000e+00> : vector<16x128xf32>
    %32 = tpu.matmul %30, %31, %cst_18 {dimension_numbers = #tpu.dot_dimension_numbers<[1], [0], [0], [1], [0, 0, 1, 1], [], []>} : vector<16x256xbf16>, vector<256x128xbf16>, vector<16x128xf32> -> vector<16x128xf32>
    %c1_19 = arith.constant 1 : index
    %c768 = arith.constant 768 : index
    %33 = vector.load %arg4[%c1_19, %c768] : memref<2x896xf32, #tpu.memory_space<vmem>>, vector<1x128xf32>
    %34 = vector.broadcast %33 : vector<1x128xf32> to vector<16x128xf32>
    %35 = arith.addf %32, %34 : vector<16x128xf32>
    %c0_20 = arith.constant 0 : index
    %c0_21 = arith.constant 0 : index
    %36 = vector.load %arg5[%c0_20, %c0_21] : memref<16x128xf32, #tpu.memory_space<vmem>>, vector<16x128xf32>
    tpu.vector_store %arg5[%c0_20, %c0_21], %35 {strides = array<i32>} : memref<16x128xf32, #tpu.memory_space<vmem>>, vector<16x128xf32>,
    return
  }
}

</mosaic_0001>

<llo_original>
// kernel: conv_encoder_forward.1
$region0: #{conv_encoder_forward.1}
  #allocation0 [shape = 'u32[]', space=smem, size = 0x4, offset = 0x4, fixed_abs, tag = 'smem constant byte address 0x4 - core index']
  #allocation1 [shape = 'u32[72,128]{1,0:T(1,128)}', space=vmem, size = 0x9000, scoped, tag = 'internal scratch']
  %s0 = inlined_call_operand.vmem [shape: bf16[16,1024], index: 0, kind: input, shape index: {}]
  %s1 = inlined_call_operand.hbm [shape: s8[1024,512], index: 1, kind: input, shape index: {}]
  %s2 = inlined_call_operand.vmem [shape: s8[512,256], index: 2, kind: input, shape index: {}]
  %s3 = inlined_call_operand.hbm [shape: bf16[256,128], index: 3, kind: input, shape index: {}]
  %s4 = inlined_call_operand.vmem [shape: f32[2,896], index: 4, kind: input, shape index: {}]
  %s5 = inlined_call_operand.vmem [shape: f32[16,128], index: 5, kind: output, shape index: {}]
  %s6 = sld [smem:[#allocation0]]
  $region38: #{conv_encoder_forward.1} parent=0
    _
  %s8 = ssub.s32 1, %s6
  %s9 = scalar_select 0, %s8, %s6
  $region1: #{conv_encoder_forward.1} parent=0
    #allocation2 [shape = 'u8[524288]{0}', space=vmem, size = 0x80000, scoped, tag = 'input window, operand 1, single buffered']
    #allocation3 [shape = 's32[1]{0}', space=sflag, size = 0x4, scoped, tag = 'scoped memory for conv_encoder_forward.1']
    #allocation4 [shape = 'u8[65536]{0}', space=vmem, size = 0x10000, scoped, tag = 'input window, operand 3, single buffered']
    #allocation5 [shape = 's32[1]{0}', space=sflag, size = 0x4, scoped, tag = 'scoped memory for conv_encoder_forward.1']
    %10 = vsyncpa [#allocation3], 0
    %11 = vsyncpa [#allocation5], 0
    // Predicated region
    $region2: #{conv_encoder_forward.1} parent=1 // pred_check
      _
    $region3: #{conv_encoder_forward.1} parent=1 // pred_check_branch
      %13 = sbr.rel (0) target = $region5
    $region4: #{conv_encoder_forward.1} parent=1 // pred_region
      _
    $region5: #{conv_encoder_forward.1} parent=1 // pred_fallthru
      _
    // Predicated region
    $region6: #{conv_encoder_forward.1} parent=1 // pred_check
      _
    $region7: #{conv_encoder_forward.1} parent=1 // pred_check_branch
      %15 = sbr.rel (0) target = $region9
    $region8: #{conv_encoder_forward.1} parent=1 // pred_region
      %17 = vsyncadd [#allocation3], 0
      %s18 = sshll.u32 %s1, 4
      %s19 = int_to_ptr.hbm [resolvable:$true] %s18
      %s20 = sshll.u32 [#allocation2], 4
      %s21 = int_to_ptr.vmem [resolvable:$true] %s20
      %26 = dma.hbm_to_vmem [thread:$0]  %s19, 16384, %s21, [#allocation3], 512, 512, 32
    $region9: #{conv_encoder_forward.1} parent=1 // pred_fallthru
      _
    // Predicated region
    $region10: #{conv_encoder_forward.1} parent=1 // pred_check
      _
    $region11: #{conv_encoder_forward.1} parent=1 // pred_check_branch
      %28 = sbr.rel (0) target = $region13
    $region12: #{conv_encoder_forward.1} parent=1 // pred_region
      _
    $region13: #{conv_encoder_forward.1} parent=1 // pred_fallthru
      _
    // Predicated region
    $region14: #{conv_encoder_forward.1} parent=1 // pred_check
      _
    $region15: #{conv_encoder_forward.1} parent=1 // pred_check_branch
      %30 = sbr.rel (0) target = $region17
    $region16: #{conv_encoder_forward.1} parent=1 // pred_region
      %32 = vsyncadd [#allocation5], 0
      %s33 = sshll.u32 %s3, 4
      %s34 = int_to_ptr.hbm [resolvable:$true] %s33
      %s35 = sshll.u32 [#allocation4], 4
      %s36 = int_to_ptr.vmem [resolvable:$true] %s35
      %41 = dma.hbm_to_vmem [thread:$0]  %s34, 2048, %s36, [#allocation5], 64, 64, 4
    $region17: #{conv_encoder_forward.1} parent=1 // pred_fallthru
      _
    // Predicated region
    $region18: #{conv_encoder_forward.1} parent=1 // pred_check
      _
    $region19: #{conv_encoder_forward.1} parent=1 // pred_check_branch
      %43 = sbr.rel (0) target = $region21
    $region20: #{conv_encoder_forward.1} parent=1 // pred_region
      _
    $region21: #{conv_encoder_forward.1} parent=1 // pred_fallthru
      _
    // Predicated region
    $region22: #{conv_encoder_forward.1} parent=1 // pred_check
      _
    $region23: #{conv_encoder_forward.1} parent=1 // pred_check_branch
      %45 = sbr.rel (0) target = $region25
    $region24: #{conv_encoder_forward.1} parent=1 // pred_region
      %47 = dma.done [#allocation3], 16384
    $region25: #{conv_encoder_forward.1} parent=1 // pred_fallthru
      _
    // Predicated region
    $region26: #{conv_encoder_forward.1} parent=1 // pred_check
      _
    $region27: #{conv_encoder_forward.1} parent=1 // pred_check_branch
      %49 = sbr.rel (0) target = $region29
    $region28: #{conv_encoder_forward.1} parent=1 // pred_region
      %51 = dma.done [#allocation5], 2048
    $region29: #{conv_encoder_forward.1} parent=1 // pred_fallthru
      _
    %v52 = vld [vmem:[%s0] sm:$0xff]
    %v53 = vld [vmem:[%s0 + $0x8] sm:$0xff]
    %v54 = vld [vmem:[%s0 + $0x10] sm:$0xff]
    %v55 = vld [vmem:[%s0 + $0x18] sm:$0xff]
    %v56 = vld [vmem:[%s0 + $0x20] sm:$0xff]
    %v57 = vld [vmem:[%s0 + $0x28] sm:$0xff]
    %v58 = vld [vmem:[%s0 + $0x30] sm:$0xff]
    %v59 = vld [vmem:[%s0 + $0x38] sm:$0xff]
    %v60 = vld [vmem:[#allocation2] sm:$0xff]
    %v61 = vld [vmem:[#allocation2 + $0x8] sm:$0xff]
    %v62 = vld [vmem:[#allocation2 + $0x10] sm:$0xff]
    %v63 = vld [vmem:[#allocation2 + $0x18] sm:$0xff]
    %v64 = vld [vmem:[#allocation2 + $0x20] sm:$0xff]
    %v65 = vld [vmem:[#allocation2 + $0x28] sm:$0xff]
    %v66 = vld [vmem:[#allocation2 + $0x30] sm:$0xff]
    %v67 = vld [vmem:[#allocation2 + $0x38] sm:$0xff]
    %v68 = vld [vmem:[#allocation2 + $0x40] sm:$0xff]
    %v69 = vld [vmem:[#allocation2 + $0x48] sm:$0xff]
    %v70 = vld [vmem:[#allocation2 + $0x50] sm:$0xff]
    %v71 = vld [vmem:[#allocation2 + $0x58] sm:$0xff]
    %v72 = vld [vmem:[#allocation2 + $0x60] sm:$0xff]
    %v73 = vld [vmem:[#allocation2 + $0x68] sm:$0xff]
    %v74 = vld [vmem:[#allocation2 + $0x70] sm:$0xff]
    %v75 = vld [vmem:[#allocation2 + $0x78] sm:$0xff]
    %v76 = vld [vmem:[#allocation2 + $0x80] sm:$0xff]
    %v77 = vld [vmem:[#allocation2 + $0x88] sm:$0xff]
    %v78 = vld [vmem:[#allocation2 + $0x90] sm:$0xff]
    %v79 = vld [vmem:[#allocation2 + $0x98] sm:$0xff]
    %v80 = vld [vmem:[#allocation2 + $0xa0] sm:$0xff]
    %v81 = vld [vmem:[#allocation2 + $0xa8] sm:$0xff]
    %v82 = vld [vmem:[#allocation2 + $0xb0] sm:$0xff]
    %v83 = vld [vmem:[#allocation2 + $0xb8] sm:$0xff]
    %v84 = vld [vmem:[#allocation2 + $0xc0] sm:$0xff]
    %v85 = vld [vmem:[#allocation2 + $0xc8] sm:$0xff]
    %v86 = vld [vmem:[#allocation2 + $0xd0] sm:$0xff]
    %v87 = vld [vmem:[#allocation2 + $0xd8] sm:$0xff]
    %v88 = vld [vmem:[#allocation2 + $0xe0] sm:$0xff]
    %v89 = vld [vmem:[#allocation2 + $0xe8] sm:$0xff]
    %v90 = vld [vmem:[#allocation2 + $0xf0] sm:$0xff]
    %v91 = vld [vmem:[#allocation2 + $0xf8] sm:$0xff]
    %v92 = vld [vmem:[#allocation2 + $0x100] sm:$0xff]
    %v93 = vld [vmem:[#allocation2 + $0x108] sm:$0xff]
    %v94 = vld [vmem:[#allocation2 + $0x110] sm:$0xff]
    %v95 = vld [vmem:[#allocation2 + $0x118] sm:$0xff]
    %v96 = vld [vmem:[#allocation2 + $0x120] sm:$0xff]
    %v97 = vld [vmem:[#allocation2 + $0x128] sm:$0xff]
    %v98 = vld [vmem:[#allocation2 + $0x130] sm:$0xff]
    %v99 = vld [vmem:[#allocation2 + $0x138] sm:$0xff]
    %v100 = vld [vmem:[#allocation2 + $0x140] sm:$0xff]
    %v101 = vld [vmem:[#allocation2 + $0x148] sm:$0xff]
    %v102 = vld [vmem:[#allocation2 + $0x150] sm:$0xff]
    %v103 = vld [vmem:[#allocation2 + $0x158] sm:$0xff]
    %v104 = vld [vmem:[#allocation2 + $0x160] sm:$0xff]
    %v105 = vld [vmem:[#allocation2 + $0x168] sm:$0xff]
    %v106 = vld [vmem:[#allocation2 + $0x170] sm:$0xff]
    %v107 = vld [vmem:[#allocation2 + $0x178] sm:$0xff]
    %v108 = vld [vmem:[#allocation2 + $0x180] sm:$0xff]
    %v109 = vld [vmem:[#allocation2 + $0x188] sm:$0xff]
    %v110 = vld [vmem:[#allocation2 + $0x190] sm:$0xff]
    %v111 = vld [vmem:[#allocation2 + $0x198] sm:$0xff]
    %v112 = vld [vmem:[#allocation2 + $0x1a0] sm:$0xff]
    %v113 = vld [vmem:[#allocation2 + $0x1a8] sm:$0xff]
    %v114 = vld [vmem:[#allocation2 + $0x1b0] sm:$0xff]
    %v115 = vld [vmem:[#allocation2 + $0x1b8] sm:$0xff]
    %v116 = vld [vmem:[#allocation2 + $0x1c0] sm:$0xff]
    %v117 = vld [vmem:[#allocation2 + $0x1c8] sm:$0xff]
    %v118 = vld [vmem:[#allocation2 + $0x1d0] sm:$0xff]
    %v119 = vld [vmem:[#allocation2 + $0x1d8] sm:$0xff]
    %v120 = vld [vmem:[#allocation2 + $0x1e0] sm:$0xff]
    %v121 = vld [vmem:[#allocation2 + $0x1e8] sm:$0xff]
    %v122 = vld [vmem:[#allocation2 + $0x1f0] sm:$0xff]
    %v123 = vld [vmem:[#allocation2 + $0x1f8] sm:$0xff]
    %v124 = vld [vmem:[#allocation2 + $0x200] sm:$0xff]
    %v125 = vld [vmem:[#allocation2 + $0x208] sm:$0xff]
    %v126 = vld [vmem:[#allocation2 + $0x210] sm:$0xff]
    %v127 = vld [vmem:[#allocation2 + $0x218] sm:$0xff]
    %v128 = vld [vmem:[#allocation2 + $0x220] sm:$0xff]
    %v129 = vld [vmem:[#allocation2 + $0x228] sm:$0xff]
    %v130 = vld [vmem:[#allocation2 + $0x230] sm:$0xff]
    %v131 = vld [vmem:[#allocation2 + $0x238] sm:$0xff]
    %v132 = vld [vmem:[#allocation2 + $0x240] sm:$0xff]
    %v133 = vld [vmem:[#allocation2 + $0x248] sm:$0xff]
    %v134 = vld [vmem:[#allocation2 + $0x250] sm:$0xff]
    %v135 = vld [vmem:[#allocation2 + $0x258] sm:$0xff]
    %v136 = vld [vmem:[#allocation2 + $0x260] sm:$0xff]
    %v137 = vld [vmem:[#allocation2 + $0x268] sm:$0xff]
    %v138 = vld [vmem:[#allocation2 + $0x270] sm:$0xff]
    %v139 = vld [vmem:[#allocation2 + $0x278] sm:$0xff]
    %v140 = vld [vmem:[#allocation2 + $0x280] sm:$0xff]
    %v141 = vld [vmem:[#allocation2 + $0x288] sm:$0xff]
    %v142 = vld [vmem:[#allocation2 + $0x290] sm:$0xff]
    %v143 = vld [vmem:[#allocation2 + $0x298] sm:$0xff]
    %v144 = vld [vmem:[#allocation2 + $0x2a0] sm:$0xff]
    %v145 = vld [vmem:[#allocation2 + $0x2a8] sm:$0xff]
    %v146 = vld [vmem:[#allocation2 + $0x2b0] sm:$0xff]
    %v147 = vld [vmem:[#allocation2 + $0x2b8] sm:$0xff]
    %v148 = vld [vmem:[#allocation2 + $0x2c0] sm:$0xff]
    %v149 = vld [vmem:[#allocation2 + $0x2c8] sm:$0xff]
    %v150 = vld [vmem:[#allocation2 + $0x2d0] sm:$0xff]
    %v151 = vld [vmem:[#allocation2 + $0x2d8] sm:$0xff]
    %v152 = vld [vmem:[#allocation2 + $0x2e0] sm:$0xff]
    %v153 = vld [vmem:[#allocation2 + $0x2e8] sm:$0xff]
    %v154 = vld [vmem:[#allocation2 + $0x2f0] sm:$0xff]
    %v155 = vld [vmem:[#allocation2 + $0x2f8] sm:$0xff]
    %v156 = vld [vmem:[#allocation2 + $0x300] sm:$0xff]
    %v157 = vld [vmem:[#allocation2 + $0x308] sm:$0xff]
    %v158 = vld [vmem:[#allocation2 + $0x310] sm:$0xff]
    %v159 = vld [vmem:[#allocation2 + $0x318] sm:$0xff]
    %v160 = vld [vmem:[#allocation2 + $0x320] sm:$0xff]
    %v161 = vld [vmem:[#allocation2 + $0x328] sm:$0xff]
    %v162 = vld [vmem:[#allocation2 + $0x330] sm:$0xff]
    %v163 = vld [vmem:[#allocation2 + $0x338] sm:$0xff]
    %v164 = vld [vmem:[#allocation2 + $0x340] sm:$0xff]
    %v165 = vld [vmem:[#allocation2 + $0x348] sm:$0xff]
    %v166 = vld [vmem:[#allocation2 + $0x350] sm:$0xff]
    %v167 = vld [vmem:[#allocation2 + $0x358] sm:$0xff]
    %v168 = vld [vmem:[#allocation2 + $0x360] sm:$0xff]
    %v169 = vld [vmem:[#allocation2 + $0x368] sm:$0xff]
    %v170 = vld [vmem:[#allocation2 + $0x370] sm:$0xff]
    %v171 = vld [vmem:[#allocation2 + $0x378] sm:$0xff]
    %v172 = vld [vmem:[#allocation2 + $0x380] sm:$0xff]
    %v173 = vld [vmem:[#allocation2 + $0x388] sm:$0xff]
    %v174 = vld [vmem:[#allocation2 + $0x390] sm:$0xff]
    %v175 = vld [vmem:[#allocation2 + $0x398] sm:$0xff]
    %v176 = vld [vmem:[#allocation2 + $0x3a0] sm:$0xff]
    %v177 = vld [vmem:[#allocation2 + $0x3a8] sm:$0xff]
    %v178 = vld [vmem:[#allocation2 + $0x3b0] sm:$0xff]
    %v179 = vld [vmem:[#allocation2 + $0x3b8] sm:$0xff]
    %v180 = vld [vmem:[#allocation2 + $0x3c0] sm:$0xff]
    %v181 = vld [vmem:[#allocation2 + $0x3c8] sm:$0xff]
    %v182 = vld [vmem:[#allocation2 + $0x3d0] sm:$0xff]
    %v183 = vld [vmem:[#allocation2 + $0x3d8] sm:$0xff]
    %v184 = vld [vmem:[#allocation2 + $0x3e0] sm:$0xff]
    %v185 = vld [vmem:[#allocation2 + $0x3e8] sm:$0xff]
    %v186 = vld [vmem:[#allocation2 + $0x3f0] sm:$0xff]
    %v187 = vld [vmem:[#allocation2 + $0x3f8] sm:$0xff]
    %v188 = vunpack.c.0.s8 %v60
    %v189 = vunpack.c.0.s8 %v61
    %v190 = vunpack.c.0.s8 %v62
    %v191 = vunpack.c.0.s8 %v63
    %v192 = vunpack.c.1.s8 %v60
    %v193 = vunpack.c.1.s8 %v61
    %v194 = vunpack.c.1.s8 %v62
    %v195 = vunpack.c.1.s8 %v63
    %v196 = vunpack.c.2.s8 %v60
    %v197 = vunpack.c.2.s8 %v61
    %v198 = vunpack.c.2.s8 %v62
    %v199 = vunpack.c.2.s8 %v63
    %v200 = vunpack.c.3.s8 %v60
    %v201 = vunpack.c.3.s8 %v61
    %v202 = vunpack.c.3.s8 %v62
    %v203 = vunpack.c.3.s8 %v63
    %v204 = vunpack.c.0.s8 %v64
    %v205 = vunpack.c.0.s8 %v65
    %v206 = vunpack.c.0.s8 %v66
    %v207 = vunpack.c.0.s8 %v67
    %v208 = vunpack.c.1.s8 %v64
    %v209 = vunpack.c.1.s8 %v65
    %v210 = vunpack.c.1.s8 %v66
    %v211 = vunpack.c.1.s8 %v67
    %v212 = vunpack.c.2.s8 %v64
    %v213 = vunpack.c.2.s8 %v65
    %v214 = vunpack.c.2.s8 %v66
    %v215 = vunpack.c.2.s8 %v67
    %v216 = vunpack.c.3.s8 %v64
    %v217 = vunpack.c.3.s8 %v65
    %v218 = vunpack.c.3.s8 %v66
    %v219 = vunpack.c.3.s8 %v67
    %v220 = vunpack.c.0.s8 %v68
    %v221 = vunpack.c.0.s8 %v69
    %v222 = vunpack.c.0.s8 %v70
    %v223 = vunpack.c.0.s8 %v71
    %v224 = vunpack.c.1.s8 %v68
    %v225 = vunpack.c.1.s8 %v69
    %v226 = vunpack.c.1.s8 %v70
    %v227 = vunpack.c.1.s8 %v71
    %v228 = vunpack.c.2.s8 %v68
    %v229 = vunpack.c.2.s8 %v69
    %v230 = vunpack.c.2.s8 %v70
    %v231 = vunpack.c.2.s8 %v71
    %v232 = vunpack.c.3.s8 %v68
    %v233 = vunpack.c.3.s8 %v69
    %v234 = vunpack.c.3.s8 %v70
    %v235 = vunpack.c.3.s8 %v71
    %v236 = vunpack.c.0.s8 %v72
    %v237 = vunpack.c.0.s8 %v73
    %v238 = vunpack.c.0.s8 %v74
    %v239 = vunpack.c.0.s8 %v75
    %v240 = vunpack.c.1.s8 %v72
    %v241 = vunpack.c.1.s8 %v73
    %v242 = vunpack.c.1.s8 %v74
    %v243 = vunpack.c.1.s8 %v75
    %v244 = vunpack.c.2.s8 %v72
    %v245 = vunpack.c.2.s8 %v73
    %v246 = vunpack.c.2.s8 %v74
    %v247 = vunpack.c.2.s8 %v75
    %v248 = vunpack.c.3.s8 %v72
    %v249 = vunpack.c.3.s8 %v73
    %v250 = vunpack.c.3.s8 %v74
    %v251 = vunpack.c.3.s8 %v75
    %v252 = vunpack.c.0.s8 %v76
    %v253 = vunpack.c.0.s8 %v77
    %v254 = vunpack.c.0.s8 %v78
    %v255 = vunpack.c.0.s8 %v79
    %v256 = vunpack.c.1.s8 %v76
    %v257 = vunpack.c.1.s8 %v77
    %v258 = vunpack.c.1.s8 %v78
    %v259 = vunpack.c.1.s8 %v79
    %v260 = vunpack.c.2.s8 %v76
    %v261 = vunpack.c.2.s8 %v77
    %v262 = vunpack.c.2.s8 %v78
    %v263 = vunpack.c.2.s8 %v79
    %v264 = vunpack.c.3.s8 %v76
    %v265 = vunpack.c.3.s8 %v77
    %v266 = vunpack.c.3.s8 %v78
    %v267 = vunpack.c.3.s8 %v79
    %v268 = vunpack.c.0.s8 %v80
    %v269 = vunpack.c.0.s8 %v81
    %v270 = vunpack.c.0.s8 %v82
    %v271 = vunpack.c.0.s8 %v83
    %v272 = vunpack.c.1.s8 %v80
    %v273 = vunpack.c.1.s8 %v81
    %v274 = vunpack.c.1.s8 %v82
    %v275 = vunpack.c.1.s8 %v83
    %v276 = vunpack.c.2.s8 %v80
    %v277 = vunpack.c.2.s8 %v81
    %v278 = vunpack.c.2.s8 %v82
    %v279 = vunpack.c.2.s8 %v83
    %v280 = vunpack.c.3.s8 %v80
    %v281 = vunpack.c.3.s8 %v81
    %v282 = vunpack.c.3.s8 %v82
    %v283 = vunpack.c.3.s8 %v83
    %v284 = vunpack.c.0.s8 %v84
    %v285 = vunpack.c.0.s8 %v85
    %v286 = vunpack.c.0.s8 %v86
    %v287 = vunpack.c.0.s8 %v87
    %v288 = vunpack.c.1.s8 %v84
    %v289 = vunpack.c.1.s8 %v85
    %v290 = vunpack.c.1.s8 %v86
    %v291 = vunpack.c.1.s8 %v87
    %v292 = vunpack.c.2.s8 %v84
    %v293 = vunpack.c.2.s8 %v85
    %v294 = vunpack.c.2.s8 %v86
    %v295 = vunpack.c.2.s8 %v87
    %v296 = vunpack.c.3.s8 %v84
    %v297 = vunpack.c.3.s8 %v85
    %v298 = vunpack.c.3.s8 %v86
    %v299 = vunpack.c.3.s8 %v87
    %v300 = vunpack.c.0.s8 %v88
    %v301 = vunpack.c.0.s8 %v89
    %v302 = vunpack.c.0.s8 %v90
    %v303 = vunpack.c.0.s8 %v91
    %v304 = vunpack.c.1.s8 %v88
    %v305 = vunpack.c.1.s8 %v89
    %v306 = vunpack.c.1.s8 %v90
    %v307 = vunpack.c.1.s8 %v91
    %v308 = vunpack.c.2.s8 %v88
    %v309 = vunpack.c.2.s8 %v89
    %v310 = vunpack.c.2.s8 %v90
    %v311 = vunpack.c.2.s8 %v91
    %v312 = vunpack.c.3.s8 %v88
    %v313 = vunpack.c.3.s8 %v89
    %v314 = vunpack.c.3.s8 %v90
    %v315 = vunpack.c.3.s8 %v91
    %v316 = vunpack.c.0.s8 %v92
    %v317 = vunpack.c.0.s8 %v93
    %v318 = vunpack.c.0.s8 %v94
    %v319 = vunpack.c.0.s8 %v95
    %v320 = vunpack.c.1.s8 %v92
    %v321 = vunpack.c.1.s8 %v93
    %v322 = vunpack.c.1.s8 %v94
    %v323 = vunpack.c.1.s8 %v95
    %v324 = vunpack.c.2.s8 %v92
    %v325 = vunpack.c.2.s8 %v93
    %v326 = vunpack.c.2.s8 %v94
    %v327 = vunpack.c.2.s8 %v95
    %v328 = vunpack.c.3.s8 %v92
    %v329 = vunpack.c.3.s8 %v93
    %v330 = vunpack.c.3.s8 %v94
    %v331 = vunpack.c.3.s8 %v95
    %v332 = vunpack.c.0.s8 %v96
    %v333 = vunpack.c.0.s8 %v97
    %v334 = vunpack.c.0.s8 %v98
    %v335 = vunpack.c.0.s8 %v99
    %v336 = vunpack.c.1.s8 %v96
    %v337 = vunpack.c.1.s8 %v97
    %v338 = vunpack.c.1.s8 %v98
    %v339 = vunpack.c.1.s8 %v99
    %v340 = vunpack.c.2.s8 %v96
    %v341 = vunpack.c.2.s8 %v97
    %v342 = vunpack.c.2.s8 %v98
    %v343 = vunpack.c.2.s8 %v99
    %v344 = vunpack.c.3.s8 %v96
    %v345 = vunpack.c.3.s8 %v97
    %v346 = vunpack.c.3.s8 %v98
    %v347 = vunpack.c.3.s8 %v99
    %v348 = vunpack.c.0.s8 %v100
    %v349 = vunpack.c.0.s8 %v101
    %v350 = vunpack.c.0.s8 %v102
    %v351 = vunpack.c.0.s8 %v103
    %v352 = vunpack.c.1.s8 %v100
    %v353 = vunpack.c.1.s8 %v101
    %v354 = vunpack.c.1.s8 %v102
    %v355 = vunpack.c.1.s8 %v103
    %v356 = vunpack.c.2.s8 %v100
    %v357 = vunpack.c.2.s8 %v101
    %v358 = vunpack.c.2.s8 %v102
    %v359 = vunpack.c.2.s8 %v103
    %v360 = vunpack.c.3.s8 %v100
    %v361 = vunpack.c.3.s8 %v101
    %v362 = vunpack.c.3.s8 %v102
    %v363 = vunpack.c.3.s8 %v103
    %v364 = vunpack.c.0.s8 %v104
    %v365 = vunpack.c.0.s8 %v105
    %v366 = vunpack.c.0.s8 %v106
    %v367 = vunpack.c.0.s8 %v107
    %v368 = vunpack.c.1.s8 %v104
    %v369 = vunpack.c.1.s8 %v105
    %v370 = vunpack.c.1.s8 %v106
    %v371 = vunpack.c.1.s8 %v107
    %v372 = vunpack.c.2.s8 %v104
    %v373 = vunpack.c.2.s8 %v105
    %v374 = vunpack.c.2.s8 %v106
    %v375 = vunpack.c.2.s8 %v107
    %v376 = vunpack.c.3.s8 %v104
    %v377 = vunpack.c.3.s8 %v105
    %v378 = vunpack.c.3.s8 %v106
    %v379 = vunpack.c.3.s8 %v107
    %v380 = vunpack.c.0.s8 %v108
    %v381 = vunpack.c.0.s8 %v109
    %v382 = vunpack.c.0.s8 %v110
    %v383 = vunpack.c.0.s8 %v111
    %v384 = vunpack.c.1.s8 %v108
    %v385 = vunpack.c.1.s8 %v109
    %v386 = vunpack.c.1.s8 %v110
    %v387 = vunpack.c.1.s8 %v111
    %v388 = vunpack.c.2.s8 %v108
    %v389 = vunpack.c.2.s8 %v109
    %v390 = vunpack.c.2.s8 %v110
    %v391 = vunpack.c.2.s8 %v111
    %v392 = vunpack.c.3.s8 %v108
    %v393 = vunpack.c.3.s8 %v109
    %v394 = vunpack.c.3.s8 %v110
    %v395 = vunpack.c.3.s8 %v111
    %v396 = vunpack.c.0.s8 %v112
    %v397 = vunpack.c.0.s8 %v113
    %v398 = vunpack.c.0.s8 %v114
    %v399 = vunpack.c.0.s8 %v115
    %v400 = vunpack.c.1.s8 %v112
    %v401 = vunpack.c.1.s8 %v113
    %v402 = vunpack.c.1.s8 %v114
    %v403 = vunpack.c.1.s8 %v115
    %v404 = vunpack.c.2.s8 %v112
    %v405 = vunpack.c.2.s8 %v113
    %v406 = vunpack.c.2.s8 %v114
    %v407 = vunpack.c.2.s8 %v115
    %v408 = vunpack.c.3.s8 %v112
    %v409 = vunpack.c.3.s8 %v113
    %v410 = vunpack.c.3.s8 %v114
    %v411 = vunpack.c.3.s8 %v115
    %v412 = vunpack.c.0.s8 %v116
    %v413 = vunpack.c.0.s8 %v117
    %v414 = vunpack.c.0.s8 %v118
    %v415 = vunpack.c.0.s8 %v119
    %v416 = vunpack.c.1.s8 %v116
    %v417 = vunpack.c.1.s8 %v117
    %v418 = vunpack.c.1.s8 %v118
    %v419 = vunpack.c.1.s8 %v119
    %v420 = vunpack.c.2.s8 %v116
    %v421 = vunpack.c.2.s8 %v117
    %v422 = vunpack.c.2.s8 %v118
    %v423 = vunpack.c.2.s8 %v119
    %v424 = vunpack.c.3.s8 %v116
    %v425 = vunpack.c.3.s8 %v117
    %v426 = vunpack.c.3.s8 %v118
    %v427 = vunpack.c.3.s8 %v119
    %v428 = vunpack.c.0.s8 %v120
    %v429 = vunpack.c.0.s8 %v121
    %v430 = vunpack.c.0.s8 %v122
    %v431 = vunpack.c.0.s8 %v123
    %v432 = vunpack.c.1.s8 %v120
    %v433 = vunpack.c.1.s8 %v121
    %v434 = vunpack.c.1.s8 %v122
    %v435 = vunpack.c.1.s8 %v123
    %v436 = vunpack.c.2.s8 %v120
    %v437 = vunpack.c.2.s8 %v121
    %v438 = vunpack.c.2.s8 %v122
    %v439 = vunpack.c.2.s8 %v123
    %v440 = vunpack.c.3.s8 %v120
    %v441 = vunpack.c.3.s8 %v121
    %v442 = vunpack.c.3.s8 %v122
    %v443 = vunpack.c.3.s8 %v123
    %v444 = vunpack.c.0.s8 %v124
    %v445 = vunpack.c.0.s8 %v125
    %v446 = vunpack.c.0.s8 %v126
    %v447 = vunpack.c.0.s8 %v127
    %v448 = vunpack.c.1.s8 %v124
    %v449 = vunpack.c.1.s8 %v125
    %v450 = vunpack.c.1.s8 %v126
    %v451 = vunpack.c.1.s8 %v127
    %v452 = vunpack.c.2.s8 %v124
    %v453 = vunpack.c.2.s8 %v125
    %v454 = vunpack.c.2.s8 %v126
    %v455 = vunpack.c.2.s8 %v127
    %v456 = vunpack.c.3.s8 %v124
    %v457 = vunpack.c.3.s8 %v125
    %v458 = vunpack.c.3.s8 %v126
    %v459 = vunpack.c.3.s8 %v127
    %v460 = vunpack.c.0.s8 %v128
    %v461 = vunpack.c.0.s8 %v129
    %v462 = vunpack.c.0.s8 %v130
    %v463 = vunpack.c.0.s8 %v131
    %v464 = vunpack.c.1.s8 %v128
    %v465 = vunpack.c.1.s8 %v129
    %v466 = vunpack.c.1.s8 %v130
    %v467 = vunpack.c.1.s8 %v131
    %v468 = vunpack.c.2.s8 %v128
    %v469 = vunpack.c.2.s8 %v129
    %v470 = vunpack.c.2.s8 %v130
    %v471 = vunpack.c.2.s8 %v131
    %v472 = vunpack.c.3.s8 %v128
    %v473 = vunpack.c.3.s8 %v129
    %v474 = vunpack.c.3.s8 %v130
    %v475 = vunpack.c.3.s8 %v131
    %v476 = vunpack.c.0.s8 %v132
    %v477 = vunpack.c.0.s8 %v133
    %v478 = vunpack.c.0.s8 %v134
    %v479 = vunpack.c.0.s8 %v135
    %v480 = vunpack.c.1.s8 %v132
    %v481 = vunpack.c.1.s8 %v133
    %v482 = vunpack.c.1.s8 %v134
    %v483 = vunpack.c.1.s8 %v135
    %v484 = vunpack.c.2.s8 %v132
    %v485 = vunpack.c.2.s8 %v133
    %v486 = vunpack.c.2.s8 %v134
    %v487 = vunpack.c.2.s8 %v135
    %v488 = vunpack.c.3.s8 %v132
    %v489 = vunpack.c.3.s8 %v133
    %v490 = vunpack.c.3.s8 %v134
    %v491 = vunpack.c.3.s8 %v135
    %v492 = vunpack.c.0.s8 %v136
    %v493 = vunpack.c.0.s8 %v137
    %v494 = vunpack.c.0.s8 %v138
    %v495 = vunpack.c.0.s8 %v139
    %v496 = vunpack.c.1.s8 %v136
    %v497 = vunpack.c.1.s8 %v137
    %v498 = vunpack.c.1.s8 %v138
    %v499 = vunpack.c.1.s8 %v139
    %v500 = vunpack.c.2.s8 %v136
    %v501 = vunpack.c.2.s8 %v137
    %v502 = vunpack.c.2.s8 %v138
    %v503 = vunpack.c.2.s8 %v139
    %v504 = vunpack.c.3.s8 %v136
    %v505 = vunpack.c.3.s8 %v137
    %v506 = vunpack.c.3.s8 %v138
    %v507 = vunpack.c.3.s8 %v139
    %v508 = vunpack.c.0.s8 %v140
    %v509 = vunpack.c.0.s8 %v141
    %v510 = vunpack.c.0.s8 %v142
    %v511 = vunpack.c.0.s8 %v143
    %v512 = vunpack.c.1.s8 %v140
    %v513 = vunpack.c.1.s8 %v141
    %v514 = vunpack.c.1.s8 %v142
    %v515 = vunpack.c.1.s8 %v143
    %v516 = vunpack.c.2.s8 %v140
    %v517 = vunpack.c.2.s8 %v141
    %v518 = vunpack.c.2.s8 %v142
    %v519 = vunpack.c.2.s8 %v143
    %v520 = vunpack.c.3.s8 %v140
    %v521 = vunpack.c.3.s8 %v141
    %v522 = vunpack.c.3.s8 %v142
    %v523 = vunpack.c.3.s8 %v143
    %v524 = vunpack.c.0.s8 %v144
    %v525 = vunpack.c.0.s8 %v145
    %v526 = vunpack.c.0.s8 %v146
    %v527 = vunpack.c.0.s8 %v147
    %v528 = vunpack.c.1.s8 %v144
    %v529 = vunpack.c.1.s8 %v145
    %v530 = vunpack.c.1.s8 %v146
    %v531 = vunpack.c.1.s8 %v147
    %v532 = vunpack.c.2.s8 %v144
    %v533 = vunpack.c.2.s8 %v145
    %v534 = vunpack.c.2.s8 %v146
    %v535 = vunpack.c.2.s8 %v147
    %v536 = vunpack.c.3.s8 %v144
    %v537 = vunpack.c.3.s8 %v145
    %v538 = vunpack.c.3.s8 %v146
    %v539 = vunpack.c.3.s8 %v147
    %v540 = vunpack.c.0.s8 %v148
    %v541 = vunpack.c.0.s8 %v149
    %v542 = vunpack.c.0.s8 %v150
    %v543 = vunpack.c.0.s8 %v151
    %v544 = vunpack.c.1.s8 %v148
    %v545 = vunpack.c.1.s8 %v149
    %v546 = vunpack.c.1.s8 %v150
    %v547 = vunpack.c.1.s8 %v151
    %v548 = vunpack.c.2.s8 %v148
    %v549 = vunpack.c.2.s8 %v149
    %v550 = vunpack.c.2.s8 %v150
    %v551 = vunpack.c.2.s8 %v151
    %v552 = vunpack.c.3.s8 %v148
    %v553 = vunpack.c.3.s8 %v149
    %v554 = vunpack.c.3.s8 %v150
    %v555 = vunpack.c.3.s8 %v151
    %v556 = vunpack.c.0.s8 %v152
    %v557 = vunpack.c.0.s8 %v153
    %v558 = vunpack.c.0.s8 %v154
    %v559 = vunpack.c.0.s8 %v155
    %v560 = vunpack.c.1.s8 %v152
    %v561 = vunpack.c.1.s8 %v153
    %v562 = vunpack.c.1.s8 %v154
    %v563 = vunpack.c.1.s8 %v155
    %v564 = vunpack.c.2.s8 %v152
    %v565 = vunpack.c.2.s8 %v153
    %v566 = vunpack.c.2.s8 %v154
    %v567 = vunpack.c.2.s8 %v155
    %v568 = vunpack.c.3.s8 %v152
    %v569 = vunpack.c.3.s8 %v153
    %v570 = vunpack.c.3.s8 %v154
    %v571 = vunpack.c.3.s8 %v155
    %v572 = vunpack.c.0.s8 %v156
    %v573 = vunpack.c.0.s8 %v157
    %v574 = vunpack.c.0.s8 %v158
    %v575 = vunpack.c.0.s8 %v159
    %v576 = vunpack.c.1.s8 %v156
    %v577 = vunpack.c.1.s8 %v157
    %v578 = vunpack.c.1.s8 %v158
    %v579 = vunpack.c.1.s8 %v159
    %v580 = vunpack.c.2.s8 %v156
    %v581 = vunpack.c.2.s8 %v157
    %v582 = vunpack.c.2.s8 %v158
    %v583 = vunpack.c.2.s8 %v159
    %v584 = vunpack.c.3.s8 %v156
    %v585 = vunpack.c.3.s8 %v157
    %v586 = vunpack.c.3.s8 %v158
    %v587 = vunpack.c.3.s8 %v159
    %v588 = vunpack.c.0.s8 %v160
    %v589 = vunpack.c.0.s8 %v161
    %v590 = vunpack.c.0.s8 %v162
    %v591 = vunpack.c.0.s8 %v163
    %v592 = vunpack.c.1.s8 %v160
    %v593 = vunpack.c.1.s8 %v161
    %v594 = vunpack.c.1.s8 %v162
    %v595 = vunpack.c.1.s8 %v163
    %v596 = vunpack.c.2.s8 %v160
    %v597 = vunpack.c.2.s8 %v161
    %v598 = vunpack.c.2.s8 %v162
    %v599 = vunpack.c.2.s8 %v163
    %v600 = vunpack.c.3.s8 %v160
    %v601 = vunpack.c.3.s8 %v161
    %v602 = vunpack.c.3.s8 %v162
    %v603 = vunpack.c.3.s8 %v163
    %v604 = vunpack.c.0.s8 %v164
    %v605 = vunpack.c.0.s8 %v165
    %v606 = vunpack.c.0.s8 %v166
    %v607 = vunpack.c.0.s8 %v167
    %v608 = vunpack.c.1.s8 %v164
    %v609 = vunpack.c.1.s8 %v165
    %v610 = vunpack.c.1.s8 %v166
    %v611 = vunpack.c.1.s8 %v167
    %v612 = vunpack.c.2.s8 %v164
    %v613 = vunpack.c.2.s8 %v165
    %v614 = vunpack.c.2.s8 %v166
    %v615 = vunpack.c.2.s8 %v167
    %v616 = vunpack.c.3.s8 %v164
    %v617 = vunpack.c.3.s8 %v165
    %v618 = vunpack.c.3.s8 %v166
    %v619 = vunpack.c.3.s8 %v167
    %v620 = vunpack.c.0.s8 %v168
    %v621 = vunpack.c.0.s8 %v169
    %v622 = vunpack.c.0.s8 %v170
    %v623 = vunpack.c.0.s8 %v171
    %v624 = vunpack.c.1.s8 %v168
    %v625 = vunpack.c.1.s8 %v169
    %v626 = vunpack.c.1.s8 %v170
    %v627 = vunpack.c.1.s8 %v171
    %v628 = vunpack.c.2.s8 %v168
    %v629 = vunpack.c.2.s8 %v169
    %v630 = vunpack.c.2.s8 %v170
    %v631 = vunpack.c.2.s8 %v171
    %v632 = vunpack.c.3.s8 %v168
    %v633 = vunpack.c.3.s8 %v169
    %v634 = vunpack.c.3.s8 %v170
    %v635 = vunpack.c.3.s8 %v171
    %v636 = vunpack.c.0.s8 %v172
    %v637 = vunpack.c.0.s8 %v173
    %v638 = vunpack.c.0.s8 %v174
    %v639 = vunpack.c.0.s8 %v175
    %v640 = vunpack.c.1.s8 %v172
    %v641 = vunpack.c.1.s8 %v173
    %v642 = vunpack.c.1.s8 %v174
    %v643 = vunpack.c.1.s8 %v175
    %v644 = vunpack.c.2.s8 %v172
    %v645 = vunpack.c.2.s8 %v173
    %v646 = vunpack.c.2.s8 %v174
    %v647 = vunpack.c.2.s8 %v175
    %v648 = vunpack.c.3.s8 %v172
    %v649 = vunpack.c.3.s8 %v173
    %v650 = vunpack.c.3.s8 %v174
    %v651 = vunpack.c.3.s8 %v175
    %v652 = vunpack.c.0.s8 %v176
    %v653 = vunpack.c.0.s8 %v177
    %v654 = vunpack.c.0.s8 %v178
    %v655 = vunpack.c.0.s8 %v179
    %v656 = vunpack.c.1.s8 %v176
    %v657 = vunpack.c.1.s8 %v177
    %v658 = vunpack.c.1.s8 %v178
    %v659 = vunpack.c.1.s8 %v179
    %v660 = vunpack.c.2.s8 %v176
    %v661 = vunpack.c.2.s8 %v177
    %v662 = vunpack.c.2.s8 %v178
    %v663 = vunpack.c.2.s8 %v179
    %v664 = vunpack.c.3.s8 %v176
    %v665 = vunpack.c.3.s8 %v177
    %v666 = vunpack.c.3.s8 %v178
    %v667 = vunpack.c.3.s8 %v179
    %v668 = vunpack.c.0.s8 %v180
    %v669 = vunpack.c.0.s8 %v181
    %v670 = vunpack.c.0.s8 %v182
    %v671 = vunpack.c.0.s8 %v183
    %v672 = vunpack.c.1.s8 %v180
    %v673 = vunpack.c.1.s8 %v181
    %v674 = vunpack.c.1.s8 %v182
    %v675 = vunpack.c.1.s8 %v183
    %v676 = vunpack.c.2.s8 %v180
    %v677 = vunpack.c.2.s8 %v181
    %v678 = vunpack.c.2.s8 %v182
    %v679 = vunpack.c.2.s8 %v183
    %v680 = vunpack.c.3.s8 %v180
    %v681 = vunpack.c.3.s8 %v181
    %v682 = vunpack.c.3.s8 %v182
    %v683 = vunpack.c.3.s8 %v183
    %v684 = vunpack.c.0.s8 %v184
    %v685 = vunpack.c.0.s8 %v185
    %v686 = vunpack.c.0.s8 %v186
    %v687 = vunpack.c.0.s8 %v187
    %v688 = vunpack.c.1.s8 %v184
    %v689 = vunpack.c.1.s8 %v185
    %v690 = vunpack.c.1.s8 %v186
    %v691 = vunpack.c.1.s8 %v187
    %v692 = vunpack.c.2.s8 %v184
    %v693 = vunpack.c.2.s8 %v185
    %v694 = vunpack.c.2.s8 %v186
    %v695 = vunpack.c.2.s8 %v187
    %v696 = vunpack.c.3.s8 %v184
    %v697 = vunpack.c.3.s8 %v185
    %v698 = vunpack.c.3.s8 %v186
    %v699 = vunpack.c.3.s8 %v187
    %v700 = vcvt.s32.f32 %v188
    %v701 = vcvt.s32.f32 %v189
    %v702 = vcvt.s32.f32 %v190
    %v703 = vcvt.s32.f32 %v191
    %v704 = vcvt.s32.f32 %v192
    %v705 = vcvt.s32.f32 %v193
    %v706 = vcvt.s32.f32 %v194
    %v707 = vcvt.s32.f32 %v195
    %v708 = vcvt.s32.f32 %v196
    %v709 = vcvt.s32.f32 %v197
    %v710 = vcvt.s32.f32 %v198
    %v711 = vcvt.s32.f32 %v199
    %v712 = vcvt.s32.f32 %v200
    %v713 = vcvt.s32.f32 %v201
    %v714 = vcvt.s32.f32 %v202
    %v715 = vcvt.s32.f32 %v203
    %v716 = vcvt.s32.f32 %v204
    %v717 = vcvt.s32.f32 %v205
    %v718 = vcvt.s32.f32 %v206
    %v719 = vcvt.s32.f32 %v207
    %v720 = vcvt.s32.f32 %v208
    %v721 = vcvt.s32.f32 %v209
    %v722 = vcvt.s32.f32 %v210
    %v723 = vcvt.s32.f32 %v211
    %v724 = vcvt.s32.f32 %v212
    %v725 = vcvt.s32.f32 %v213
    %v726 = vcvt.s32.f32 %v214
    %v727 = vcvt.s32.f32 %v215
    %v728 = vcvt.s32.f32 %v216
    %v729 = vcvt.s32.f32 %v217
    %v730 = vcvt.s32.f32 %v218
    %v731 = vcvt.s32.f32 %v219
    %v732 = vcvt.s32.f32 %v220
    %v733 = vcvt.s32.f32 %v221
    %v734 = vcvt.s32.f32 %v222
    %v735 = vcvt.s32.f32 %v223
    %v736 = vcvt.s32.f32 %v224
    %v737 = vcvt.s32.f32 %v225
    %v738 = vcvt.s32.f32 %v226
    %v739 = vcvt.s32.f32 %v227
    %v740 = vcvt.s32.f32 %v228
    %v741 = vcvt.s32.f32 %v229
    %v742 = vcvt.s32.f32 %v230
    %v743 = vcvt.s32.f32 %v231
    %v744 = vcvt.s32.f32 %v232
    %v745 = vcvt.s32.f32 %v233
    %v746 = vcvt.s32.f32 %v234
    %v747 = vcvt.s32.f32 %v235
    %v748 = vcvt.s32.f32 %v236
    %v749 = vcvt.s32.f32 %v237
    %v750 = vcvt.s32.f32 %v238
    %v751 = vcvt.s32.f32 %v239
    %v752 = vcvt.s32.f32 %v240
    %v753 = vcvt.s32.f32 %v241
    %v754 = vcvt.s32.f32 %v242
    %v755 = vcvt.s32.f32 %v243
    %v756 = vcvt.s32.f32 %v244
    %v757 = vcvt.s32.f32 %v245
    %v758 = vcvt.s32.f32 %v246
    %v759 = vcvt.s32.f32 %v247
    %v760 = vcvt.s32.f32 %v248
    %v761 = vcvt.s32.f32 %v249
    %v762 = vcvt.s32.f32 %v250
    %v763 = vcvt.s32.f32 %v251
    %v764 = vcvt.s32.f32 %v252
    %v765 = vcvt.s32.f32 %v253
    %v766 = vcvt.s32.f32 %v254
    %v767 = vcvt.s32.f32 %v255
    %v768 = vcvt.s32.f32 %v256
    %v769 = vcvt.s32.f32 %v257
    %v770 = vcvt.s32.f32 %v258
    %v771 = vcvt.s32.f32 %v259
    %v772 = vcvt.s32.f32 %v260
    %v773 = vcvt.s32.f32 %v261
    %v774 = vcvt.s32.f32 %v262
    %v775 = vcvt.s32.f32 %v263
    %v776 = vcvt.s32.f32 %v264
    %v777 = vcvt.s32.f32 %v265
    %v778 = vcvt.s32.f32 %v266
    %v779 = vcvt.s32.f32 %v267
    %v780 = vcvt.s32.f32 %v268
    %v781 = vcvt.s32.f32 %v269
    %v782 = vcvt.s32.f32 %v270
    %v783 = vcvt.s32.f32 %v271
    %v784 = vcvt.s32.f32 %v272
    %v785 = vcvt.s32.f32 %v273
    %v786 = vcvt.s32.f32 %v274
    %v787 = vcvt.s32.f32 %v275
    %v788 = vcvt.s32.f32 %v276
    %v789 = vcvt.s32.f32 %v277
    %v790 = vcvt.s32.f32 %v278
    %v791 = vcvt.s32.f32 %v279
    %v792 = vcvt.s32.f32 %v280
    %v793 = vcvt.s32.f32 %v281
    %v794 = vcvt.s32.f32 %v282
    %v795 = vcvt.s32.f32 %v283
    %v796 = vcvt.s32.f32 %v284
    %v797 = vcvt.s32.f32 %v285
    %v798 = vcvt.s32.f32 %v286
    %v799 = vcvt.s32.f32 %v287
    %v800 = vcvt.s32.f32 %v288
    %v801 = vcvt.s32.f32 %v289
    %v802 = vcvt.s32.f32 %v290
    %v803 = vcvt.s32.f32 %v291
    %v804 = vcvt.s32.f32 %v292
    %v805 = vcvt.s32.f32 %v293
    %v806 = vcvt.s32.f32 %v294
    %v807 = vcvt.s32.f32 %v295
    %v808 = vcvt.s32.f32 %v296
    %v809 = vcvt.s32.f32 %v297
    %v810 = vcvt.s32.f32 %v298
    %v811 = vcvt.s32.f32 %v299
    %v812 = vcvt.s32.f32 %v300
    %v813 = vcvt.s32.f32 %v301
    %v814 = vcvt.s32.f32 %v302
    %v815 = vcvt.s32.f32 %v303
    %v816 = vcvt.s32.f32 %v304
    %v817 = vcvt.s32.f32 %v305
    %v818 = vcvt.s32.f32 %v306
    %v819 = vcvt.s32.f32 %v307
    %v820 = vcvt.s32.f32 %v308
    %v821 = vcvt.s32.f32 %v309
    %v822 = vcvt.s32.f32 %v310
    %v823 = vcvt.s32.f32 %v311
    %v824 = vcvt.s32.f32 %v312
    %v825 = vcvt.s32.f32 %v313
    %v826 = vcvt.s32.f32 %v314
    %v827 = vcvt.s32.f32 %v315
    %v828 = vcvt.s32.f32 %v316
    %v829 = vcvt.s32.f32 %v317
    %v830 = vcvt.s32.f32 %v318
    %v831 = vcvt.s32.f32 %v319
    %v832 = vcvt.s32.f32 %v320
    %v833 = vcvt.s32.f32 %v321
    %v834 = vcvt.s32.f32 %v322
    %v835 = vcvt.s32.f32 %v323
    %v836 = vcvt.s32.f32 %v324
    %v837 = vcvt.s32.f32 %v325
    %v838 = vcvt.s32.f32 %v326
    %v839 = vcvt.s32.f32 %v327
    %v840 = vcvt.s32.f32 %v328
    %v841 = vcvt.s32.f32 %v329
    %v842 = vcvt.s32.f32 %v330
    %v843 = vcvt.s32.f32 %v331
    %v844 = vcvt.s32.f32 %v332
    %v845 = vcvt.s32.f32 %v333
    %v846 = vcvt.s32.f32 %v334
    %v847 = vcvt.s32.f32 %v335
    %v848 = vcvt.s32.f32 %v336
    %v849 = vcvt.s32.f32 %v337
    %v850 = vcvt.s32.f32 %v338
    %v851 = vcvt.s32.f32 %v339
    %v852 = vcvt.s32.f32 %v340
    %v853 = vcvt.s32.f32 %v341
    %v854 = vcvt.s32.f32 %v342
    %v855 = vcvt.s32.f32 %v343
    %v856 = vcvt.s32.f32 %v344
    %v857 = vcvt.s32.f32 %v345
    %v858 = vcvt.s32.f32 %v346
    %v859 = vcvt.s32.f32 %v347
    %v860 = vcvt.s32.f32 %v348
    %v861 = vcvt.s32.f32 %v349
    %v862 = vcvt.s32.f32 %v350
    %v863 = vcvt.s32.f32 %v351
    %v864 = vcvt.s32.f32 %v352
    %v865 = vcvt.s32.f32 %v353
    %v866 = vcvt.s32.f32 %v354
    %v867 = vcvt.s32.f32 %v355
    %v868 = vcvt.s32.f32 %v356
    %v869 = vcvt.s32.f32 %v357
    %v870 = vcvt.s32.f32 %v358
    %v871 = vcvt.s32.f32 %v359
    %v872 = vcvt.s32.f32 %v360
    %v873 = vcvt.s32.f32 %v361
    %v874 = vcvt.s32.f32 %v362
    %v875 = vcvt.s32.f32 %v363
    %v876 = vcvt.s32.f32 %v364
    %v877 = vcvt.s32.f32 %v365
    %v878 = vcvt.s32.f32 %v366
    %v879 = vcvt.s32.f32 %v367
    %v880 = vcvt.s32.f32 %v368
    %v881 = vcvt.s32.f32 %v369
    %v882 = vcvt.s32.f32 %v370
    %v883 = vcvt.s32.f32 %v371
    %v884 = vcvt.s32.f32 %v372
    %v885 = vcvt.s32.f32 %v373
    %v886 = vcvt.s32.f32 %v374
    %v887 = vcvt.s32.f32 %v375
    %v888 = vcvt.s32.f32 %v376
    %v889 = vcvt.s32.f32 %v377
    %v890 = vcvt.s32.f32 %v378
    %v891 = vcvt.s32.f32 %v379
    %v892 = vcvt.s32.f32 %v380
    %v893 = vcvt.s32.f32 %v381
    %v894 = vcvt.s32.f32 %v382
    %v895 = vcvt.s32.f32 %v383
    %v896 = vcvt.s32.f32 %v384
    %v897 = vcvt.s32.f32 %v385
    %v898 = vcvt.s32.f32 %v386
    %v899 = vcvt.s32.f32 %v387
    %v900 = vcvt.s32.f32 %v388
    %v901 = vcvt.s32.f32 %v389
    %v902 = vcvt.s32.f32 %v390
    %v903 = vcvt.s32.f32 %v391
    %v904 = vcvt.s32.f32 %v392
    %v905 = vcvt.s32.f32 %v393
    %v906 = vcvt.s32.f32 %v394
    %v907 = vcvt.s32.f32 %v395
    %v908 = vcvt.s32.f32 %v396
    %v909 = vcvt.s32.f32 %v397
    %v910 = vcvt.s32.f32 %v398
    %v911 = vcvt.s32.f32 %v399
    %v912 = vcvt.s32.f32 %v400
    %v913 = vcvt.s32.f32 %v401
    %v914 = vcvt.s32.f32 %v402
    %v915 = vcvt.s32.f32 %v403
    %v916 = vcvt.s32.f32 %v404
    %v917 = vcvt.s32.f32 %v405
    %v918 = vcvt.s32.f32 %v406
    %v919 = vcvt.s32.f32 %v407
    %v920 = vcvt.s32.f32 %v408
    %v921 = vcvt.s32.f32 %v409
    %v922 = vcvt.s32.f32 %v410
    %v923 = vcvt.s32.f32 %v411
    %v924 = vcvt.s32.f32 %v412
    %v925 = vcvt.s32.f32 %v413
    %v926 = vcvt.s32.f32 %v414
    %v927 = vcvt.s32.f32 %v415
    %v928 = vcvt.s32.f32 %v416
    %v929 = vcvt.s32.f32 %v417
    %v930 = vcvt.s32.f32 %v418
    %v931 = vcvt.s32.f32 %v419
    %v932 = vcvt.s32.f32 %v420
    %v933 = vcvt.s32.f32 %v421
    %v934 = vcvt.s32.f32 %v422
    %v935 = vcvt.s32.f32 %v423
    %v936 = vcvt.s32.f32 %v424
    %v937 = vcvt.s32.f32 %v425
    %v938 = vcvt.s32.f32 %v426
    %v939 = vcvt.s32.f32 %v427
    %v940 = vcvt.s32.f32 %v428
    %v941 = vcvt.s32.f32 %v429
    %v942 = vcvt.s32.f32 %v430
    %v943 = vcvt.s32.f32 %v431
    %v944 = vcvt.s32.f32 %v432
    %v945 = vcvt.s32.f32 %v433
    %v946 = vcvt.s32.f32 %v434
    %v947 = vcvt.s32.f32 %v435
    %v948 = vcvt.s32.f32 %v436
    %v949 = vcvt.s32.f32 %v437
    %v950 = vcvt.s32.f32 %v438
    %v951 = vcvt.s32.f32 %v439
    %v952 = vcvt.s32.f32 %v440
    %v953 = vcvt.s32.f32 %v441
    %v954 = vcvt.s32.f32 %v442
    %v955 = vcvt.s32.f32 %v443
    %v956 = vcvt.s32.f32 %v444
    %v957 = vcvt.s32.f32 %v445
    %v958 = vcvt.s32.f32 %v446
    %v959 = vcvt.s32.f32 %v447
    %v960 = vcvt.s32.f32 %v448
    %v961 = vcvt.s32.f32 %v449
    %v962 = vcvt.s32.f32 %v450
    %v963 = vcvt.s32.f32 %v451
    %v964 = vcvt.s32.f32 %v452
    %v965 = vcvt.s32.f32 %v453
    %v966 = vcvt.s32.f32 %v454
    %v967 = vcvt.s32.f32 %v455
    %v968 = vcvt.s32.f32 %v456
    %v969 = vcvt.s32.f32 %v457
    %v970 = vcvt.s32.f32 %v458
    %v971 = vcvt.s32.f32 %v459
    %v972 = vcvt.s32.f32 %v460
    %v973 = vcvt.s32.f32 %v461
    %v974 = vcvt.s32.f32 %v462
    %v975 = vcvt.s32.f32 %v463
    %v976 = vcvt.s32.f32 %v464
    %v977 = vcvt.s32.f32 %v465
    %v978 = vcvt.s32.f32 %v466
    %v979 = vcvt.s32.f32 %v467
    %v980 = vcvt.s32.f32 %v468
    %v981 = vcvt.s32.f32 %v469
    %v982 = vcvt.s32.f32 %v470
    %v983 = vcvt.s32.f32 %v471
    %v984 = vcvt.s32.f32 %v472
    %v985 = vcvt.s32.f32 %v473
    %v986 = vcvt.s32.f32 %v474
    %v987 = vcvt.s32.f32 %v475
    %v988 = vcvt.s32.f32 %v476
    %v989 = vcvt.s32.f32 %v477
    %v990 = vcvt.s32.f32 %v478
    %v991 = vcvt.s32.f32 %v479
    %v992 = vcvt.s32.f32 %v480
    %v993 = vcvt.s32.f32 %v481
    %v994 = vcvt.s32.f32 %v482
    %v995 = vcvt.s32.f32 %v483
    %v996 = vcvt.s32.f32 %v484
    %v997 = vcvt.s32.f32 %v485
    %v998 = vcvt.s32.f32 %v486
    %v999 = vcvt.s32.f32 %v487
    %v1000 = vcvt.s32.f32 %v488
    %v1001 = vcvt.s32.f32 %v489
    %v1002 = vcvt.s32.f32 %v490
    %v1003 = vcvt.s32.f32 %v491
    %v1004 = vcvt.s32.f32 %v492
    %v1005 = vcvt.s32.f32 %v493
    %v1006 = vcvt.s32.f32 %v494
    %v1007 = vcvt.s32.f32 %v495
    %v1008 = vcvt.s32.f32 %v496
    %v1009 = vcvt.s32.f32 %v497
    %v1010 = vcvt.s32.f32 %v498
    %v1011 = vcvt.s32.f32 %v499
    %v1012 = vcvt.s32.f32 %v500
    %v1013 = vcvt.s32.f32 %v501
    %v1014 = vcvt.s32.f32 %v502
    %v1015 = vcvt.s32.f32 %v503
    %v1016 = vcvt.s32.f32 %v504
    %v1017 = vcvt.s32.f32 %v505
    %v1018 = vcvt.s32.f32 %v506
    %v1019 = vcvt.s32.f32 %v507
    %v1020 = vcvt.s32.f32 %v508
    %v1021 = vcvt.s32.f32 %v509
    %v1022 = vcvt.s32.f32 %v510
    %v1023 = vcvt.s32.f32 %v511
    %v1024 = vcvt.s32.f32 %v512
    %v1025 = vcvt.s32.f32 %v513
    %v1026 = vcvt.s32.f32 %v514
    %v1027 = vcvt.s32.f32 %v515
    %v1028 = vcvt.s32.f32 %v516
    %v1029 = vcvt.s32.f32 %v517
    %v1030 = vcvt.s32.f32 %v518
    %v1031 = vcvt.s32.f32 %v519
    %v1032 = vcvt.s32.f32 %v520
    %v1033 = vcvt.s32.f32 %v521
    %v1034 = vcvt.s32.f32 %v522
    %v1035 = vcvt.s32.f32 %v523
    %v1036 = vcvt.s32.f32 %v524
    %v1037 = vcvt.s32.f32 %v525
    %v1038 = vcvt.s32.f32 %v526
    %v1039 = vcvt.s32.f32 %v527
    %v1040 = vcvt.s32.f32 %v528
    %v1041 = vcvt.s32.f32 %v529
    %v1042 = vcvt.s32.f32 %v530
    %v1043 = vcvt.s32.f32 %v531
    %v1044 = vcvt.s32.f32 %v532
    %v1045 = vcvt.s32.f32 %v533
    %v1046 = vcvt.s32.f32 %v534
    %v1047 = vcvt.s32.f32 %v535
    %v1048 = vcvt.s32.f32 %v536
    %v1049 = vcvt.s32.f32 %v537
    %v1050 = vcvt.s32.f32 %v538
    %v1051 = vcvt.s32.f32 %v539
    %v1052 = vcvt.s32.f32 %v540
    %v1053 = vcvt.s32.f32 %v541
    %v1054 = vcvt.s32.f32 %v542
    %v1055 = vcvt.s32.f32 %v543
    %v1056 = vcvt.s32.f32 %v544
    %v1057 = vcvt.s32.f32 %v545
    %v1058 = vcvt.s32.f32 %v546
    %v1059 = vcvt.s32.f32 %v547
    %v1060 = vcvt.s32.f32 %v548
    %v1061 = vcvt.s32.f32 %v549
    %v1062 = vcvt.s32.f32 %v550
    %v1063 = vcvt.s32.f32 %v551
    %v1064 = vcvt.s32.f32 %v552
    %v1065 = vcvt.s32.f32 %v553
    %v1066 = vcvt.s32.f32 %v554
    %v1067 = vcvt.s32.f32 %v555
    %v1068 = vcvt.s32.f32 %v556
    %v1069 = vcvt.s32.f32 %v557
    %v1070 = vcvt.s32.f32 %v558
    %v1071 = vcvt.s32.f32 %v559
    %v1072 = vcvt.s32.f32 %v560
    %v1073 = vcvt.s32.f32 %v561
    %v1074 = vcvt.s32.f32 %v562
    %v1075 = vcvt.s32.f32 %v563
    %v1076 = vcvt.s32.f32 %v564
    %v1077 = vcvt.s32.f32 %v565
    %v1078 = vcvt.s32.f32 %v566
    %v1079 = vcvt.s32.f32 %v567
    %v1080 = vcvt.s32.f32 %v568
    %v1081 = vcvt.s32.f32 %v569
    %v1082 = vcvt.s32.f32 %v570
    %v1083 = vcvt.s32.f32 %v571
    %v1084 = vcvt.s32.f32 %v572
    %v1085 = vcvt.s32.f32 %v573
    %v1086 = vcvt.s32.f32 %v574
    %v1087 = vcvt.s32.f32 %v575
    %v1088 = vcvt.s32.f32 %v576
    %v1089 = vcvt.s32.f32 %v577
    %v1090 = vcvt.s32.f32 %v578
    %v1091 = vcvt.s32.f32 %v579
    %v1092 = vcvt.s32.f32 %v580
    %v1093 = vcvt.s32.f32 %v581
    %v1094 = vcvt.s32.f32 %v582
    %v1095 = vcvt.s32.f32 %v583
    %v1096 = vcvt.s32.f32 %v584
    %v1097 = vcvt.s32.f32 %v585
    %v1098 = vcvt.s32.f32 %v586
    %v1099 = vcvt.s32.f32 %v587
    %v1100 = vcvt.s32.f32 %v588
    %v1101 = vcvt.s32.f32 %v589
    %v1102 = vcvt.s32.f32 %v590
    %v1103 = vcvt.s32.f32 %v591
    %v1104 = vcvt.s32.f32 %v592
    %v1105 = vcvt.s32.f32 %v593
    %v1106 = vcvt.s32.f32 %v594
    %v1107 = vcvt.s32.f32 %v595
    %v1108 = vcvt.s32.f32 %v596
    %v1109 = vcvt.s32.f32 %v597
    %v1110 = vcvt.s32.f32 %v598
    %v1111 = vcvt.s32.f32 %v599
    %v1112 = vcvt.s32.f32 %v600
    %v1113 = vcvt.s32.f32 %v601
    %v1114 = vcvt.s32.f32 %v602
    %v1115 = vcvt.s32.f32 %v603
    %v1116 = vcvt.s32.f32 %v604
    %v1117 = vcvt.s32.f32 %v605
    %v1118 = vcvt.s32.f32 %v606
    %v1119 = vcvt.s32.f32 %v607
    %v1120 = vcvt.s32.f32 %v608
    %v1121 = vcvt.s32.f32 %v609
    %v1122 = vcvt.s32.f32 %v610
    %v1123 = vcvt.s32.f32 %v611
    %v1124 = vcvt.s32.f32 %v612
    %v1125 = vcvt.s32.f32 %v613
    %v1126 = vcvt.s32.f32 %v614
    %v1127 = vcvt.s32.f32 %v615
    %v1128 = vcvt.s32.f32 %v616
    %v1129 = vcvt.s32.f32 %v617
    %v1130 = vcvt.s32.f32 %v618
    %v1131 = vcvt.s32.f32 %v619
    %v1132 = vcvt.s32.f32 %v620
    %v1133 = vcvt.s32.f32 %v621
    %v1134 = vcvt.s32.f32 %v622
    %v1135 = vcvt.s32.f32 %v623
    %v1136 = vcvt.s32.f32 %v624
    %v1137 = vcvt.s32.f32 %v625
    %v1138 = vcvt.s32.f32 %v626
    %v1139 = vcvt.s32.f32 %v627
    %v1140 = vcvt.s32.f32 %v628
    %v1141 = vcvt.s32.f32 %v629
    %v1142 = vcvt.s32.f32 %v630
    %v1143 = vcvt.s32.f32 %v631
    %v1144 = vcvt.s32.f32 %v632
    %v1145 = vcvt.s32.f32 %v633
    %v1146 = vcvt.s32.f32 %v634
    %v1147 = vcvt.s32.f32 %v635
    %v1148 = vcvt.s32.f32 %v636
    %v1149 = vcvt.s32.f32 %v637
    %v1150 = vcvt.s32.f32 %v638
    %v1151 = vcvt.s32.f32 %v639
    %v1152 = vcvt.s32.f32 %v640
    %v1153 = vcvt.s32.f32 %v641
    %v1154 = vcvt.s32.f32 %v642
    %v1155 = vcvt.s32.f32 %v643
    %v1156 = vcvt.s32.f32 %v644
    %v1157 = vcvt.s32.f32 %v645
    %v1158 = vcvt.s32.f32 %v646
    %v1159 = vcvt.s32.f32 %v647
    %v1160 = vcvt.s32.f32 %v648
    %v1161 = vcvt.s32.f32 %v649
    %v1162 = vcvt.s32.f32 %v650
    %v1163 = vcvt.s32.f32 %v651
    %v1164 = vcvt.s32.f32 %v652
    %v1165 = vcvt.s32.f32 %v653
    %v1166 = vcvt.s32.f32 %v654
    %v1167 = vcvt.s32.f32 %v655
    %v1168 = vcvt.s32.f32 %v656
    %v1169 = vcvt.s32.f32 %v657
    %v1170 = vcvt.s32.f32 %v658
    %v1171 = vcvt.s32.f32 %v659
    %v1172 = vcvt.s32.f32 %v660
    %v1173 = vcvt.s32.f32 %v661
    %v1174 = vcvt.s32.f32 %v662
    %v1175 = vcvt.s32.f32 %v663
    %v1176 = vcvt.s32.f32 %v664
    %v1177 = vcvt.s32.f32 %v665
    %v1178 = vcvt.s32.f32 %v666
    %v1179 = vcvt.s32.f32 %v667
    %v1180 = vcvt.s32.f32 %v668
    %v1181 = vcvt.s32.f32 %v669
    %v1182 = vcvt.s32.f32 %v670
    %v1183 = vcvt.s32.f32 %v671
    %v1184 = vcvt.s32.f32 %v672
    %v1185 = vcvt.s32.f32 %v673
    %v1186 = vcvt.s32.f32 %v674
    %v1187 = vcvt.s32.f32 %v675
    %v1188 = vcvt.s32.f32 %v676
    %v1189 = vcvt.s32.f32 %v677
    %v1190 = vcvt.s32.f32 %v678
    %v1191 = vcvt.s32.f32 %v679
    %v1192 = vcvt.s32.f32 %v680
    %v1193 = vcvt.s32.f32 %v681
    %v1194 = vcvt.s32.f32 %v682
    %v1195 = vcvt.s32.f32 %v683
    %v1196 = vcvt.s32.f32 %v684
    %v1197 = vcvt.s32.f32 %v685
    %v1198 = vcvt.s32.f32 %v686
    %v1199 = vcvt.s32.f32 %v687
    %v1200 = vcvt.s32.f32 %v688
    %v1201 = vcvt.s32.f32 %v689
    %v1202 = vcvt.s32.f32 %v690
    %v1203 = vcvt.s32.f32 %v691
    %v1204 = vcvt.s32.f32 %v692
    %v1205 = vcvt.s32.f32 %v693
    %v1206 = vcvt.s32.f32 %v694
    %v1207 = vcvt.s32.f32 %v695
    %v1208 = vcvt.s32.f32 %v696
    %v1209 = vcvt.s32.f32 %v697
    %v1210 = vcvt.s32.f32 %v698
    %v1211 = vcvt.s32.f32 %v699
    %v1212 = vpack.c.bf16 %v704, %v700
    %v1213 = vpack.c.bf16 %v705, %v701
    %v1214 = vpack.c.bf16 %v706, %v702
    %v1215 = vpack.c.bf16 %v707, %v703
    %v1216 = vpack.c.bf16 %v712, %v708
    %v1217 = vpack.c.bf16 %v713, %v709
    %v1218 = vpack.c.bf16 %v714, %v710
    %v1219 = vpack.c.bf16 %v715, %v711
    %v1220 = vpack.c.bf16 %v720, %v716
    %v1221 = vpack.c.bf16 %v721, %v717
    %v1222 = vpack.c.bf16 %v722, %v718
    %v1223 = vpack.c.bf16 %v723, %v719
    %v1224 = vpack.c.bf16 %v728, %v724
    %v1225 = vpack.c.bf16 %v729, %v725
    %v1226 = vpack.c.bf16 %v730, %v726
    %v1227 = vpack.c.bf16 %v731, %v727
    %v1228 = vpack.c.bf16 %v736, %v732
    %v1229 = vpack.c.bf16 %v737, %v733
    %v1230 = vpack.c.bf16 %v738, %v734
    %v1231 = vpack.c.bf16 %v739, %v735
    %v1232 = vpack.c.bf16 %v744, %v740
    %v1233 = vpack.c.bf16 %v745, %v741
    %v1234 = vpack.c.bf16 %v746, %v742
    %v1235 = vpack.c.bf16 %v747, %v743
    %v1236 = vpack.c.bf16 %v752, %v748
    %v1237 = vpack.c.bf16 %v753, %v749
    %v1238 = vpack.c.bf16 %v754, %v750
    %v1239 = vpack.c.bf16 %v755, %v751
    %v1240 = vpack.c.bf16 %v760, %v756
    %v1241 = vpack.c.bf16 %v761, %v757
    %v1242 = vpack.c.bf16 %v762, %v758
    %v1243 = vpack.c.bf16 %v763, %v759
    %v1244 = vpack.c.bf16 %v768, %v764
    %v1245 = vpack.c.bf16 %v769, %v765
    %v1246 = vpack.c.bf16 %v770, %v766
    %v1247 = vpack.c.bf16 %v771, %v767
    %v1248 = vpack.c.bf16 %v776, %v772
    %v1249 = vpack.c.bf16 %v777, %v773
    %v1250 = vpack.c.bf16 %v778, %v774
    %v1251 = vpack.c.bf16 %v779, %v775
    %v1252 = vpack.c.bf16 %v784, %v780
    %v1253 = vpack.c.bf16 %v785, %v781
    %v1254 = vpack.c.bf16 %v786, %v782
    %v1255 = vpack.c.bf16 %v787, %v783
    %v1256 = vpack.c.bf16 %v792, %v788
    %v1257 = vpack.c.bf16 %v793, %v789
    %v1258 = vpack.c.bf16 %v794, %v790
    %v1259 = vpack.c.bf16 %v795, %v791
    %v1260 = vpack.c.bf16 %v800, %v796
    %v1261 = vpack.c.bf16 %v801, %v797
    %v1262 = vpack.c.bf16 %v802, %v798
    %v1263 = vpack.c.bf16 %v803, %v799
    %v1264 = vpack.c.bf16 %v808, %v804
    %v1265 = vpack.c.bf16 %v809, %v805
    %v1266 = vpack.c.bf16 %v810, %v806
    %v1267 = vpack.c.bf16 %v811, %v807
    %v1268 = vpack.c.bf16 %v816, %v812
    %v1269 = vpack.c.bf16 %v817, %v813
    %v1270 = vpack.c.bf16 %v818, %v814
    %v1271 = vpack.c.bf16 %v819, %v815
    %v1272 = vpack.c.bf16 %v824, %v820
    %v1273 = vpack.c.bf16 %v825, %v821
    %v1274 = vpack.c.bf16 %v826, %v822
    %v1275 = vpack.c.bf16 %v827, %v823
    %v1276 = vpack.c.bf16 %v832, %v828
    %v1277 = vpack.c.bf16 %v833, %v829
    %v1278 = vpack.c.bf16 %v834, %v830
    %v1279 = vpack.c.bf16 %v835, %v831
    %v1280 = vpack.c.bf16 %v840, %v836
    %v1281 = vpack.c.bf16 %v841, %v837
    %v1282 = vpack.c.bf16 %v842, %v838
    %v1283 = vpack.c.bf16 %v843, %v839
    %v1284 = vpack.c.bf16 %v848, %v844
    %v1285 = vpack.c.bf16 %v849, %v845
    %v1286 = vpack.c.bf16 %v850, %v846
    %v1287 = vpack.c.bf16 %v851, %v847
    %v1288 = vpack.c.bf16 %v856, %v852
    %v1289 = vpack.c.bf16 %v857, %v853
    %v1290 = vpack.c.bf16 %v858, %v854
    %v1291 = vpack.c.bf16 %v859, %v855
    %v1292 = vpack.c.bf16 %v864, %v860
    %v1293 = vpack.c.bf16 %v865, %v861
    %v1294 = vpack.c.bf16 %v866, %v862
    %v1295 = vpack.c.bf16 %v867, %v863
    %v1296 = vpack.c.bf16 %v872, %v868
    %v1297 = vpack.c.bf16 %v873, %v869
    %v1298 = vpack.c.bf16 %v874, %v870
    %v1299 = vpack.c.bf16 %v875, %v871
    %v1300 = vpack.c.bf16 %v880, %v876
    %v1301 = vpack.c.bf16 %v881, %v877
    %v1302 = vpack.c.bf16 %v882, %v878
    %v1303 = vpack.c.bf16 %v883, %v879
    %v1304 = vpack.c.bf16 %v888, %v884
    %v1305 = vpack.c.bf16 %v889, %v885
    %v1306 = vpack.c.bf16 %v890, %v886
    %v1307 = vpack.c.bf16 %v891, %v887
    %v1308 = vpack.c.bf16 %v896, %v892
    %v1309 = vpack.c.bf16 %v897, %v893
    %v1310 = vpack.c.bf16 %v898, %v894
    %v1311 = vpack.c.bf16 %v899, %v895
    %v1312 = vpack.c.bf16 %v904, %v900
    %v1313 = vpack.c.bf16 %v905, %v901
    %v1314 = vpack.c.bf16 %v906, %v902
    %v1315 = vpack.c.bf16 %v907, %v903
    %v1316 = vpack.c.bf16 %v912, %v908
    %v1317 = vpack.c.bf16 %v913, %v909
    %v1318 = vpack.c.bf16 %v914, %v910
    %v1319 = vpack.c.bf16 %v915, %v911
    %v1320 = vpack.c.bf16 %v920, %v916
    %v1321 = vpack.c.bf16 %v921, %v917
    %v1322 = vpack.c.bf16 %v922, %v918
    %v1323 = vpack.c.bf16 %v923, %v919
    %v1324 = vpack.c.bf16 %v928, %v924
    %v1325 = vpack.c.bf16 %v929, %v925
    %v1326 = vpack.c.bf16 %v930, %v926
    %v1327 = vpack.c.bf16 %v931, %v927
    %v1328 = vpack.c.bf16 %v936, %v932
    %v1329 = vpack.c.bf16 %v937, %v933
    %v1330 = vpack.c.bf16 %v938, %v934
    %v1331 = vpack.c.bf16 %v939, %v935
    %v1332 = vpack.c.bf16 %v944, %v940
    %v1333 = vpack.c.bf16 %v945, %v941
    %v1334 = vpack.c.bf16 %v946, %v942
    %v1335 = vpack.c.bf16 %v947, %v943
    %v1336 = vpack.c.bf16 %v952, %v948
    %v1337 = vpack.c.bf16 %v953, %v949
    %v1338 = vpack.c.bf16 %v954, %v950
    %v1339 = vpack.c.bf16 %v955, %v951
    %v1340 = vpack.c.bf16 %v960, %v956
    %v1341 = vpack.c.bf16 %v961, %v957
    %v1342 = vpack.c.bf16 %v962, %v958
    %v1343 = vpack.c.bf16 %v963, %v959
    %v1344 = vpack.c.bf16 %v968, %v964
    %v1345 = vpack.c.bf16 %v969, %v965
    %v1346 = vpack.c.bf16 %v970, %v966
    %v1347 = vpack.c.bf16 %v971, %v967
    %v1348 = vpack.c.bf16 %v976, %v972
    %v1349 = vpack.c.bf16 %v977, %v973
    %v1350 = vpack.c.bf16 %v978, %v974
    %v1351 = vpack.c.bf16 %v979, %v975
    %v1352 = vpack.c.bf16 %v984, %v980
    %v1353 = vpack.c.bf16 %v985, %v981
    %v1354 = vpack.c.bf16 %v986, %v982
    %v1355 = vpack.c.bf16 %v987, %v983
    %v1356 = vpack.c.bf16 %v992, %v988
    %v1357 = vpack.c.bf16 %v993, %v989
    %v1358 = vpack.c.bf16 %v994, %v990
    %v1359 = vpack.c.bf16 %v995, %v991
    %v1360 = vpack.c.bf16 %v1000, %v996
    %v1361 = vpack.c.bf16 %v1001, %v997
    %v1362 = vpack.c.bf16 %v1002, %v998
    %v1363 = vpack.c.bf16 %v1003, %v999
    %v1364 = vpack.c.bf16 %v1008, %v1004
    %v1365 = vpack.c.bf16 %v1009, %v1005
    %v1366 = vpack.c.bf16 %v1010, %v1006
    %v1367 = vpack.c.bf16 %v1011, %v1007
    %v1368 = vpack.c.bf16 %v1016, %v1012
    %v1369 = vpack.c.bf16 %v1017, %v1013
    %v1370 = vpack.c.bf16 %v1018, %v1014
    %v1371 = vpack.c.bf16 %v1019, %v1015
    %v1372 = vpack.c.bf16 %v1024, %v1020
    %v1373 = vpack.c.bf16 %v1025, %v1021
    %v1374 = vpack.c.bf16 %v1026, %v1022
    %v1375 = vpack.c.bf16 %v1027, %v1023
    %v1376 = vpack.c.bf16 %v1032, %v1028
    %v1377 = vpack.c.bf16 %v1033, %v1029
    %v1378 = vpack.c.bf16 %v1034, %v1030
    %v1379 = vpack.c.bf16 %v1035, %v1031
    %v1380 = vpack.c.bf16 %v1040, %v1036
    %v1381 = vpack.c.bf16 %v1041, %v1037
    %v1382 = vpack.c.bf16 %v1042, %v1038
    %v1383 = vpack.c.bf16 %v1043, %v1039
    %v1384 = vpack.c.bf16 %v1048, %v1044
    %v1385 = vpack.c.bf16 %v1049, %v1045
    %v1386 = vpack.c.bf16 %v1050, %v1046
    %v1387 = vpack.c.bf16 %v1051, %v1047
    %v1388 = vpack.c.bf16 %v1056, %v1052
    %v1389 = vpack.c.bf16 %v1057, %v1053
    %v1390 = vpack.c.bf16 %v1058, %v1054
    %v1391 = vpack.c.bf16 %v1059, %v1055
    %v1392 = vpack.c.bf16 %v1064, %v1060
    %v1393 = vpack.c.bf16 %v1065, %v1061
    %v1394 = vpack.c.bf16 %v1066, %v1062
    %v1395 = vpack.c.bf16 %v1067, %v1063
    %v1396 = vpack.c.bf16 %v1072, %v1068
    %v1397 = vpack.c.bf16 %v1073, %v1069
    %v1398 = vpack.c.bf16 %v1074, %v1070
    %v1399 = vpack.c.bf16 %v1075, %v1071
    %v1400 = vpack.c.bf16 %v1080, %v1076
    %v1401 = vpack.c.bf16 %v1081, %v1077
    %v1402 = vpack.c.bf16 %v1082, %v1078
    %v1403 = vpack.c.bf16 %v1083, %v1079
    %v1404 = vpack.c.bf16 %v1088, %v1084
    %v1405 = vpack.c.bf16 %v1089, %v1085
    %v1406 = vpack.c.bf16 %v1090, %v1086
    %v1407 = vpack.c.bf16 %v1091, %v1087
    %v1408 = vpack.c.bf16 %v1096, %v1092
    %v1409 = vpack.c.bf16 %v1097, %v1093
    %v1410 = vpack.c.bf16 %v1098, %v1094
    %v1411 = vpack.c.bf16 %v1099, %v1095
    %v1412 = vpack.c.bf16 %v1104, %v1100
    %v1413 = vpack.c.bf16 %v1105, %v1101
    %v1414 = vpack.c.bf16 %v1106, %v1102
    %v1415 = vpack.c.bf16 %v1107, %v1103
    %v1416 = vpack.c.bf16 %v1112, %v1108
    %v1417 = vpack.c.bf16 %v1113, %v1109
    %v1418 = vpack.c.bf16 %v1114, %v1110
    %v1419 = vpack.c.bf16 %v1115, %v1111
    %v1420 = vpack.c.bf16 %v1120, %v1116
    %v1421 = vpack.c.bf16 %v1121, %v1117
    %v1422 = vpack.c.bf16 %v1122, %v1118
    %v1423 = vpack.c.bf16 %v1123, %v1119
    %v1424 = vpack.c.bf16 %v1128, %v1124
    %v1425 = vpack.c.bf16 %v1129, %v1125
    %v1426 = vpack.c.bf16 %v1130, %v1126
    %v1427 = vpack.c.bf16 %v1131, %v1127
    %v1428 = vpack.c.bf16 %v1136, %v1132
    %v1429 = vpack.c.bf16 %v1137, %v1133
    %v1430 = vpack.c.bf16 %v1138, %v1134
    %v1431 = vpack.c.bf16 %v1139, %v1135
    %v1432 = vpack.c.bf16 %v1144, %v1140
    %v1433 = vpack.c.bf16 %v1145, %v1141
    %v1434 = vpack.c.bf16 %v1146, %v1142
    %v1435 = vpack.c.bf16 %v1147, %v1143
    %v1436 = vpack.c.bf16 %v1152, %v1148
    %v1437 = vpack.c.bf16 %v1153, %v1149
    %v1438 = vpack.c.bf16 %v1154, %v1150
    %v1439 = vpack.c.bf16 %v1155, %v1151
    %v1440 = vpack.c.bf16 %v1160, %v1156
    %v1441 = vpack.c.bf16 %v1161, %v1157
    %v1442 = vpack.c.bf16 %v1162, %v1158
    %v1443 = vpack.c.bf16 %v1163, %v1159
    %v1444 = vpack.c.bf16 %v1168, %v1164
    %v1445 = vpack.c.bf16 %v1169, %v1165
    %v1446 = vpack.c.bf16 %v1170, %v1166
    %v1447 = vpack.c.bf16 %v1171, %v1167
    %v1448 = vpack.c.bf16 %v1176, %v1172
    %v1449 = vpack.c.bf16 %v1177, %v1173
    %v1450 = vpack.c.bf16 %v1178, %v1174
    %v1451 = vpack.c.bf16 %v1179, %v1175
    %v1452 = vpack.c.bf16 %v1184, %v1180
    %v1453 = vpack.c.bf16 %v1185, %v1181
    %v1454 = vpack.c.bf16 %v1186, %v1182
    %v1455 = vpack.c.bf16 %v1187, %v1183
    %v1456 = vpack.c.bf16 %v1192, %v1188
    %v1457 = vpack.c.bf16 %v1193, %v1189
    %v1458 = vpack.c.bf16 %v1194, %v1190
    %v1459 = vpack.c.bf16 %v1195, %v1191
    %v1460 = vpack.c.bf16 %v1200, %v1196
    %v1461 = vpack.c.bf16 %v1201, %v1197
    %v1462 = vpack.c.bf16 %v1202, %v1198
    %v1463 = vpack.c.bf16 %v1203, %v1199
    %v1464 = vpack.c.bf16 %v1208, %v1204
    %v1465 = vpack.c.bf16 %v1209, %v1205
    %v1466 = vpack.c.bf16 %v1210, %v1206
    %v1467 = vpack.c.bf16 %v1211, %v1207
    %v1476 = vunpack.c.l.b16 %v52
    %v1477 = vunpack.c.h.b16 %v52
    %v1478 = vunpack.c.l.b16 %v53
    %v1479 = vunpack.c.h.b16 %v53
    %v1480 = vunpack.c.l.b16 %v54
    %v1481 = vunpack.c.h.b16 %v54
    %v1482 = vunpack.c.l.b16 %v55
    %v1483 = vunpack.c.h.b16 %v55
    %v1484 = vunpack.c.l.b16 %v56
    %v1485 = vunpack.c.h.b16 %v56
    %v1486 = vunpack.c.l.b16 %v57
    %v1487 = vunpack.c.h.b16 %v57
    %v1488 = vunpack.c.l.b16 %v58
    %v1489 = vunpack.c.h.b16 %v58
    %v1490 = vunpack.c.l.b16 %v59
    %v1491 = vunpack.c.h.b16 %v59
    %v1492 = vpack.c.b16 %v1484, %v1476
    %v1493 = vpack.c.b16 %v1485, %v1477
    %v1494 = vpack.c.b16 %v1486, %v1478
    %v1495 = vpack.c.b16 %v1487, %v1479
    %v1496 = vpack.c.b16 %v1488, %v1480
    %v1497 = vpack.c.b16 %v1489, %v1481
    %v1498 = vpack.c.b16 %v1490, %v1482
    %v1499 = vpack.c.b16 %v1491, %v1483
    %1508 = vmatpush.bf16.msra.mxu0 %v1240
    %1509 = vmatpush.bf16.msra.mxu0 %v1236
    %1510 = vmatpush.bf16.msra.mxu0 %v1232
    %1511 = vmatpush.bf16.msra.mxu0 %v1228
    %1512 = vmatpush.bf16.msra.mxu0 %v1224
    %1513 = vmatpush.bf16.msra.mxu0 %v1220
    %1514 = vmatpush.bf16.msra.mxu0 %v1216
    %1515 = vmatpush.bf16.msra.mxu0 %v1212
    %1516 = vmatmul.bf16.gmra.mxu0 %v1492
    %v1517 = vpop.f32.mrf.mxu0
    %v1518 = vadd.f32 0.0, %v1517
    %v1519 = vpop.f32.mrf.mxu0
    %v1520 = vadd.f32 0.0, %v1519
    %1521 = vdwg.mxu0
    %1522 = vmatpush.bf16.msra.mxu0 %v1272
    %1523 = vmatpush.bf16.msra.mxu0 %v1268
    %1524 = vmatpush.bf16.msra.mxu0 %v1264
    %1525 = vmatpush.bf16.msra.mxu0 %v1260
    %1526 = vmatpush.bf16.msra.mxu0 %v1256
    %1527 = vmatpush.bf16.msra.mxu0 %v1252
    %1528 = vmatpush.bf16.msra.mxu0 %v1248
    %1529 = vmatpush.bf16.msra.mxu0 %v1244
    %1530 = vmatmul.bf16.gmra.mxu0 %v1493
    %v1531 = vpop.f32.mrf.mxu0
    %v1532 = vadd.f32 %v1518, %v1531
    %v1533 = vpop.f32.mrf.mxu0
    %v1534 = vadd.f32 %v1520, %v1533
    %1535 = vdwg.mxu0
    %1536 = vmatpush.bf16.msra.mxu0 %v1304
    %1537 = vmatpush.bf16.msra.mxu0 %v1300
    %1538 = vmatpush.bf16.msra.mxu0 %v1296
    %1539 = vmatpush.bf16.msra.mxu0 %v1292
    %1540 = vmatpush.bf16.msra.mxu0 %v1288
    %1541 = vmatpush.bf16.msra.mxu0 %v1284
    %1542 = vmatpush.bf16.msra.mxu0 %v1280
    %1543 = vmatpush.bf16.msra.mxu0 %v1276
    %1544 = vmatmul.bf16.gmra.mxu0 %v1494
    %v1545 = vpop.f32.mrf.mxu0
    %v1546 = vadd.f32 %v1532, %v1545
    %v1547 = vpop.f32.mrf.mxu0
    %v1548 = vadd.f32 %v1534, %v1547
    %1549 = vdwg.mxu0
    %1550 = vmatpush.bf16.msra.mxu0 %v1336
    %1551 = vmatpush.bf16.msra.mxu0 %v1332
    %1552 = vmatpush.bf16.msra.mxu0 %v1328
    %1553 = vmatpush.bf16.msra.mxu0 %v1324
    %1554 = vmatpush.bf16.msra.mxu0 %v1320
    %1555 = vmatpush.bf16.msra.mxu0 %v1316
    %1556 = vmatpush.bf16.msra.mxu0 %v1312
    %1557 = vmatpush.bf16.msra.mxu0 %v1308
    %1558 = vmatmul.bf16.gmra.mxu0 %v1495
    %v1559 = vpop.f32.mrf.mxu0
    %v1560 = vadd.f32 %v1546, %v1559
    %v1561 = vpop.f32.mrf.mxu0
    %v1562 = vadd.f32 %v1548, %v1561
    %1563 = vdwg.mxu0
    %1564 = vmatpush.bf16.msra.mxu0 %v1368
    %1565 = vmatpush.bf16.msra.mxu0 %v1364
    %1566 = vmatpush.bf16.msra.mxu0 %v1360
    %1567 = vmatpush.bf16.msra.mxu0 %v1356
    %1568 = vmatpush.bf16.msra.mxu0 %v1352
    %1569 = vmatpush.bf16.msra.mxu0 %v1348
    %1570 = vmatpush.bf16.msra.mxu0 %v1344
    %1571 = vmatpush.bf16.msra.mxu0 %v1340
    %1572 = vmatmul.bf16.gmra.mxu0 %v1496
    %v1573 = vpop.f32.mrf.mxu0
    %v1574 = vadd.f32 %v1560, %v1573
    %v1575 = vpop.f32.mrf.mxu0
    %v1576 = vadd.f32 %v1562, %v1575
    %1577 = vdwg.mxu0
    %1578 = vmatpush.bf16.msra.mxu0 %v1400
    %1579 = vmatpush.bf16.msra.mxu0 %v1396
    %1580 = vmatpush.bf16.msra.mxu0 %v1392
    %1581 = vmatpush.bf16.msra.mxu0 %v1388
    %1582 = vmatpush.bf16.msra.mxu0 %v1384
    %1583 = vmatpush.bf16.msra.mxu0 %v1380
    %1584 = vmatpush.bf16.msra.mxu0 %v1376
    %1585 = vmatpush.bf16.msra.mxu0 %v1372
    %1586 = vmatmul.bf16.gmra.mxu0 %v1497
    %v1587 = vpop.f32.mrf.mxu0
    %v1588 = vadd.f32 %v1574, %v1587
    %v1589 = vpop.f32.mrf.mxu0
    %v1590 = vadd.f32 %v1576, %v1589
    %1591 = vdwg.mxu0
    %1592 = vmatpush.bf16.msra.mxu0 %v1432
    %1593 = vmatpush.bf16.msra.mxu0 %v1428
    %1594 = vmatpush.bf16.msra.mxu0 %v1424
    %1595 = vmatpush.bf16.msra.mxu0 %v1420
    %1596 = vmatpush.bf16.msra.mxu0 %v1416
    %1597 = vmatpush.bf16.msra.mxu0 %v1412
    %1598 = vmatpush.bf16.msra.mxu0 %v1408
    %1599 = vmatpush.bf16.msra.mxu0 %v1404
    %1600 = vmatmul.bf16.gmra.mxu0 %v1498
    %v1601 = vpop.f32.mrf.mxu0
    %v1602 = vadd.f32 %v1588, %v1601
    %v1603 = vpop.f32.mrf.mxu0
    %v1604 = vadd.f32 %v1590, %v1603
    %1605 = vdwg.mxu0
    %1606 = vmatpush.bf16.msra.mxu0 %v1464
    %1607 = vmatpush.bf16.msra.mxu0 %v1460
    %1608 = vmatpush.bf16.msra.mxu0 %v1456
    %1609 = vmatpush.bf16.msra.mxu0 %v1452
    %1610 = vmatpush.bf16.msra.mxu0 %v1448
    %1611 = vmatpush.bf16.msra.mxu0 %v1444
    %1612 = vmatpush.bf16.msra.mxu0 %v1440
    %1613 = vmatpush.bf16.msra.mxu0 %v1436
    %1614 = vmatmul.bf16.gmra.mxu0 %v1499
    %v1615 = vpop.f32.mrf.mxu0
    %v1616 = vadd.f32 %v1602, %v1615
    %v1617 = vpop.f32.mrf.mxu0
    %v1618 = vadd.f32 %v1604, %v1617
    %1619 = vdwg.mxu0
    %1620 = vmatpush.bf16.msra.mxu0 %v1241
    %1621 = vmatpush.bf16.msra.mxu0 %v1237
    %1622 = vmatpush.bf16.msra.mxu0 %v1233
    %1623 = vmatpush.bf16.msra.mxu0 %v1229
    %1624 = vmatpush.bf16.msra.mxu0 %v1225
    %1625 = vmatpush.bf16.msra.mxu0 %v1221
    %1626 = vmatpush.bf16.msra.mxu0 %v1217
    %1627 = vmatpush.bf16.msra.mxu0 %v1213
    %1628 = vmatmul.bf16.gmra.mxu0 %v1492
    %v1629 = vpop.f32.mrf.mxu0
    %v1630 = vadd.f32 0.0, %v1629
    %v1631 = vpop.f32.mrf.mxu0
    %v1632 = vadd.f32 0.0, %v1631
    %1633 = vdwg.mxu0
    %1634 = vmatpush.bf16.msra.mxu0 %v1273
    %1635 = vmatpush.bf16.msra.mxu0 %v1269
    %1636 = vmatpush.bf16.msra.mxu0 %v1265
    %1637 = vmatpush.bf16.msra.mxu0 %v1261
    %1638 = vmatpush.bf16.msra.mxu0 %v1257
    %1639 = vmatpush.bf16.msra.mxu0 %v1253
    %1640 = vmatpush.bf16.msra.mxu0 %v1249
    %1641 = vmatpush.bf16.msra.mxu0 %v1245
    %1642 = vmatmul.bf16.gmra.mxu0 %v1493
    %v1643 = vpop.f32.mrf.mxu0
    %v1644 = vadd.f32 %v1630, %v1643
    %v1645 = vpop.f32.mrf.mxu0
    %v1646 = vadd.f32 %v1632, %v1645
    %1647 = vdwg.mxu0
    %1648 = vmatpush.bf16.msra.mxu0 %v1305
    %1649 = vmatpush.bf16.msra.mxu0 %v1301
    %1650 = vmatpush.bf16.msra.mxu0 %v1297
    %1651 = vmatpush.bf16.msra.mxu0 %v1293
    %1652 = vmatpush.bf16.msra.mxu0 %v1289
    %1653 = vmatpush.bf16.msra.mxu0 %v1285
    %1654 = vmatpush.bf16.msra.mxu0 %v1281
    %1655 = vmatpush.bf16.msra.mxu0 %v1277
    %1656 = vmatmul.bf16.gmra.mxu0 %v1494
    %v1657 = vpop.f32.mrf.mxu0
    %v1658 = vadd.f32 %v1644, %v1657
    %v1659 = vpop.f32.mrf.mxu0
    %v1660 = vadd.f32 %v1646, %v1659
    %1661 = vdwg.mxu0
    %1662 = vmatpush.bf16.msra.mxu0 %v1337
    %1663 = vmatpush.bf16.msra.mxu0 %v1333
    %1664 = vmatpush.bf16.msra.mxu0 %v1329
    %1665 = vmatpush.bf16.msra.mxu0 %v1325
    %1666 = vmatpush.bf16.msra.mxu0 %v1321
    %1667 = vmatpush.bf16.msra.mxu0 %v1317
    %1668 = vmatpush.bf16.msra.mxu0 %v1313
    %1669 = vmatpush.bf16.msra.mxu0 %v1309
    %1670 = vmatmul.bf16.gmra.mxu0 %v1495
    %v1671 = vpop.f32.mrf.mxu0
    %v1672 = vadd.f32 %v1658, %v1671
    %v1673 = vpop.f32.mrf.mxu0
    %v1674 = vadd.f32 %v1660, %v1673
    %1675 = vdwg.mxu0
    %1676 = vmatpush.bf16.msra.mxu0 %v1369
    %1677 = vmatpush.bf16.msra.mxu0 %v1365
    %1678 = vmatpush.bf16.msra.mxu0 %v1361
    %1679 = vmatpush.bf16.msra.mxu0 %v1357
    %1680 = vmatpush.bf16.msra.mxu0 %v1353
    %1681 = vmatpush.bf16.msra.mxu0 %v1349
    %1682 = vmatpush.bf16.msra.mxu0 %v1345
    %1683 = vmatpush.bf16.msra.mxu0 %v1341
    %1684 = vmatmul.bf16.gmra.mxu0 %v1496
    %v1685 = vpop.f32.mrf.mxu0
    %v1686 = vadd.f32 %v1672, %v1685
    %v1687 = vpop.f32.mrf.mxu0
    %v1688 = vadd.f32 %v1674, %v1687
    %1689 = vdwg.mxu0
    %1690 = vmatpush.bf16.msra.mxu0 %v1401
    %1691 = vmatpush.bf16.msra.mxu0 %v1397
    %1692 = vmatpush.bf16.msra.mxu0 %v1393
    %1693 = vmatpush.bf16.msra.mxu0 %v1389
    %1694 = vmatpush.bf16.msra.mxu0 %v1385
    %1695 = vmatpush.bf16.msra.mxu0 %v1381
    %1696 = vmatpush.bf16.msra.mxu0 %v1377
    %1697 = vmatpush.bf16.msra.mxu0 %v1373
    %1698 = vmatmul.bf16.gmra.mxu0 %v1497
    %v1699 = vpop.f32.mrf.mxu0
    %v1700 = vadd.f32 %v1686, %v1699
    %v1701 = vpop.f32.mrf.mxu0
    %v1702 = vadd.f32 %v1688, %v1701
    %1703 = vdwg.mxu0
    %1704 = vmatpush.bf16.msra.mxu0 %v1433
    %1705 = vmatpush.bf16.msra.mxu0 %v1429
    %1706 = vmatpush.bf16.msra.mxu0 %v1425
    %1707 = vmatpush.bf16.msra.mxu0 %v1421
    %1708 = vmatpush.bf16.msra.mxu0 %v1417
    %1709 = vmatpush.bf16.msra.mxu0 %v1413
    %1710 = vmatpush.bf16.msra.mxu0 %v1409
    %1711 = vmatpush.bf16.msra.mxu0 %v1405
    %1712 = vmatmul.bf16.gmra.mxu0 %v1498
    %v1713 = vpop.f32.mrf.mxu0
    %v1714 = vadd.f32 %v1700, %v1713
    %v1715 = vpop.f32.mrf.mxu0
    %v1716 = vadd.f32 %v1702, %v1715
    %1717 = vdwg.mxu0
    %1718 = vmatpush.bf16.msra.mxu0 %v1465
    %1719 = vmatpush.bf16.msra.mxu0 %v1461
    %1720 = vmatpush.bf16.msra.mxu0 %v1457
    %1721 = vmatpush.bf16.msra.mxu0 %v1453
    %1722 = vmatpush.bf16.msra.mxu0 %v1449
    %1723 = vmatpush.bf16.msra.mxu0 %v1445
    %1724 = vmatpush.bf16.msra.mxu0 %v1441
    %1725 = vmatpush.bf16.msra.mxu0 %v1437
    %1726 = vmatmul.bf16.gmra.mxu0 %v1499
    %v1727 = vpop.f32.mrf.mxu0
    %v1728 = vadd.f32 %v1714, %v1727
    %v1729 = vpop.f32.mrf.mxu0
    %v1730 = vadd.f32 %v1716, %v1729
    %1731 = vdwg.mxu0
    %1732 = vmatpush.bf16.msra.mxu0 %v1242
    %1733 = vmatpush.bf16.msra.mxu0 %v1238
    %1734 = vmatpush.bf16.msra.mxu0 %v1234
    %1735 = vmatpush.bf16.msra.mxu0 %v1230
    %1736 = vmatpush.bf16.msra.mxu0 %v1226
    %1737 = vmatpush.bf16.msra.mxu0 %v1222
    %1738 = vmatpush.bf16.msra.mxu0 %v1218
    %1739 = vmatpush.bf16.msra.mxu0 %v1214
    %1740 = vmatmul.bf16.gmra.mxu0 %v1492
    %v1741 = vpop.f32.mrf.mxu0
    %v1742 = vadd.f32 0.0, %v1741
    %v1743 = vpop.f32.mrf.mxu0
    %v1744 = vadd.f32 0.0, %v1743
    %1745 = vdwg.mxu0
    %1746 = vmatpush.bf16.msra.mxu0 %v1274
    %1747 = vmatpush.bf16.msra.mxu0 %v1270
    %1748 = vmatpush.bf16.msra.mxu0 %v1266
    %1749 = vmatpush.bf16.msra.mxu0 %v1262
    %1750 = vmatpush.bf16.msra.mxu0 %v1258
    %1751 = vmatpush.bf16.msra.mxu0 %v1254
    %1752 = vmatpush.bf16.msra.mxu0 %v1250
    %1753 = vmatpush.bf16.msra.mxu0 %v1246
    %1754 = vmatmul.bf16.gmra.mxu0 %v1493
    %v1755 = vpop.f32.mrf.mxu0
    %v1756 = vadd.f32 %v1742, %v1755
    %v1757 = vpop.f32.mrf.mxu0
    %v1758 = vadd.f32 %v1744, %v1757
    %1759 = vdwg.mxu0
    %1760 = vmatpush.bf16.msra.mxu0 %v1306
    %1761 = vmatpush.bf16.msra.mxu0 %v1302
    %1762 = vmatpush.bf16.msra.mxu0 %v1298
    %1763 = vmatpush.bf16.msra.mxu0 %v1294
    %1764 = vmatpush.bf16.msra.mxu0 %v1290
    %1765 = vmatpush.bf16.msra.mxu0 %v1286
    %1766 = vmatpush.bf16.msra.mxu0 %v1282
    %1767 = vmatpush.bf16.msra.mxu0 %v1278
    %1768 = vmatmul.bf16.gmra.mxu0 %v1494
    %v1769 = vpop.f32.mrf.mxu0
    %v1770 = vadd.f32 %v1756, %v1769
    %v1771 = vpop.f32.mrf.mxu0
    %v1772 = vadd.f32 %v1758, %v1771
    %1773 = vdwg.mxu0
    %1774 = vmatpush.bf16.msra.mxu0 %v1338
    %1775 = vmatpush.bf16.msra.mxu0 %v1334
    %1776 = vmatpush.bf16.msra.mxu0 %v1330
    %1777 = vmatpush.bf16.msra.mxu0 %v1326
    %1778 = vmatpush.bf16.msra.mxu0 %v1322
    %1779 = vmatpush.bf16.msra.mxu0 %v1318
    %1780 = vmatpush.bf16.msra.mxu0 %v1314
    %1781 = vmatpush.bf16.msra.mxu0 %v1310
    %1782 = vmatmul.bf16.gmra.mxu0 %v1495
    %v1783 = vpop.f32.mrf.mxu0
    %v1784 = vadd.f32 %v1770, %v1783
    %v1785 = vpop.f32.mrf.mxu0
    %v1786 = vadd.f32 %v1772, %v1785
    %1787 = vdwg.mxu0
    %1788 = vmatpush.bf16.msra.mxu0 %v1370
    %1789 = vmatpush.bf16.msra.mxu0 %v1366
    %1790 = vmatpush.bf16.msra.mxu0 %v1362
    %1791 = vmatpush.bf16.msra.mxu0 %v1358
    %1792 = vmatpush.bf16.msra.mxu0 %v1354
    %1793 = vmatpush.bf16.msra.mxu0 %v1350
    %1794 = vmatpush.bf16.msra.mxu0 %v1346
    %1795 = vmatpush.bf16.msra.mxu0 %v1342
    %1796 = vmatmul.bf16.gmra.mxu0 %v1496
    %v1797 = vpop.f32.mrf.mxu0
    %v1798 = vadd.f32 %v1784, %v1797
    %v1799 = vpop.f32.mrf.mxu0
    %v1800 = vadd.f32 %v1786, %v1799
    %1801 = vdwg.mxu0
    %1802 = vmatpush.bf16.msra.mxu0 %v1402
    %1803 = vmatpush.bf16.msra.mxu0 %v1398
    %1804 = vmatpush.bf16.msra.mxu0 %v1394
    %1805 = vmatpush.bf16.msra.mxu0 %v1390
    %1806 = vmatpush.bf16.msra.mxu0 %v1386
    %1807 = vmatpush.bf16.msra.mxu0 %v1382
    %1808 = vmatpush.bf16.msra.mxu0 %v1378
    %1809 = vmatpush.bf16.msra.mxu0 %v1374
    %1810 = vmatmul.bf16.gmra.mxu0 %v1497
    %v1811 = vpop.f32.mrf.mxu0
    %v1812 = vadd.f32 %v1798, %v1811
    %v1813 = vpop.f32.mrf.mxu0
    %v1814 = vadd.f32 %v1800, %v1813
    %1815 = vdwg.mxu0
    %1816 = vmatpush.bf16.msra.mxu0 %v1434
    %1817 = vmatpush.bf16.msra.mxu0 %v1430
    %1818 = vmatpush.bf16.msra.mxu0 %v1426
    %1819 = vmatpush.bf16.msra.mxu0 %v1422
    %1820 = vmatpush.bf16.msra.mxu0 %v1418
    %1821 = vmatpush.bf16.msra.mxu0 %v1414
    %1822 = vmatpush.bf16.msra.mxu0 %v1410
    %1823 = vmatpush.bf16.msra.mxu0 %v1406
    %1824 = vmatmul.bf16.gmra.mxu0 %v1498
    %v1825 = vpop.f32.mrf.mxu0
    %v1826 = vadd.f32 %v1812, %v1825
    %v1827 = vpop.f32.mrf.mxu0
    %v1828 = vadd.f32 %v1814, %v1827
    %1829 = vdwg.mxu0
    %1830 = vmatpush.bf16.msra.mxu0 %v1466
    %1831 = vmatpush.bf16.msra.mxu0 %v1462
    %1832 = vmatpush.bf16.msra.mxu0 %v1458
    %1833 = vmatpush.bf16.msra.mxu0 %v1454
    %1834 = vmatpush.bf16.msra.mxu0 %v1450
    %1835 = vmatpush.bf16.msra.mxu0 %v1446
    %1836 = vmatpush.bf16.msra.mxu0 %v1442
    %1837 = vmatpush.bf16.msra.mxu0 %v1438
    %1838 = vmatmul.bf16.gmra.mxu0 %v1499
    %v1839 = vpop.f32.mrf.mxu0
    %v1840 = vadd.f32 %v1826, %v1839
    %v1841 = vpop.f32.mrf.mxu0
    %v1842 = vadd.f32 %v1828, %v1841
    %1843 = vdwg.mxu0
    %1844 = vmatpush.bf16.msra.mxu0 %v1243
    %1845 = vmatpush.bf16.msra.mxu0 %v1239
    %1846 = vmatpush.bf16.msra.mxu0 %v1235
    %1847 = vmatpush.bf16.msra.mxu0 %v1231
    %1848 = vmatpush.bf16.msra.mxu0 %v1227
    %1849 = vmatpush.bf16.msra.mxu0 %v1223
    %1850 = vmatpush.bf16.msra.mxu0 %v1219
    %1851 = vmatpush.bf16.msra.mxu0 %v1215
    %1852 = vmatmul.bf16.gmra.mxu0 %v1492
    %v1853 = vpop.f32.mrf.mxu0
    %v1854 = vadd.f32 0.0, %v1853
    %v1855 = vpop.f32.mrf.mxu0
    %v1856 = vadd.f32 0.0, %v1855
    %1857 = vdwg.mxu0
    %1858 = vmatpush.bf16.msra.mxu0 %v1275
    %1859 = vmatpush.bf16.msra.mxu0 %v1271
    %1860 = vmatpush.bf16.msra.mxu0 %v1267
    %1861 = vmatpush.bf16.msra.mxu0 %v1263
    %1862 = vmatpush.bf16.msra.mxu0 %v1259
    %1863 = vmatpush.bf16.msra.mxu0 %v1255
    %1864 = vmatpush.bf16.msra.mxu0 %v1251
    %1865 = vmatpush.bf16.msra.mxu0 %v1247
    %1866 = vmatmul.bf16.gmra.mxu0 %v1493
    %v1867 = vpop.f32.mrf.mxu0
    %v1868 = vadd.f32 %v1854, %v1867
    %v1869 = vpop.f32.mrf.mxu0
    %v1870 = vadd.f32 %v1856, %v1869
    %1871 = vdwg.mxu0
    %1872 = vmatpush.bf16.msra.mxu0 %v1307
    %1873 = vmatpush.bf16.msra.mxu0 %v1303
    %1874 = vmatpush.bf16.msra.mxu0 %v1299
    %1875 = vmatpush.bf16.msra.mxu0 %v1295
    %1876 = vmatpush.bf16.msra.mxu0 %v1291
    %1877 = vmatpush.bf16.msra.mxu0 %v1287
    %1878 = vmatpush.bf16.msra.mxu0 %v1283
    %1879 = vmatpush.bf16.msra.mxu0 %v1279
    %1880 = vmatmul.bf16.gmra.mxu0 %v1494
    %v1881 = vpop.f32.mrf.mxu0
    %v1882 = vadd.f32 %v1868, %v1881
    %v1883 = vpop.f32.mrf.mxu0
    %v1884 = vadd.f32 %v1870, %v1883
    %1885 = vdwg.mxu0
    %1886 = vmatpush.bf16.msra.mxu0 %v1339
    %1887 = vmatpush.bf16.msra.mxu0 %v1335
    %1888 = vmatpush.bf16.msra.mxu0 %v1331
    %1889 = vmatpush.bf16.msra.mxu0 %v1327
    %1890 = vmatpush.bf16.msra.mxu0 %v1323
    %1891 = vmatpush.bf16.msra.mxu0 %v1319
    %1892 = vmatpush.bf16.msra.mxu0 %v1315
    %1893 = vmatpush.bf16.msra.mxu0 %v1311
    %1894 = vmatmul.bf16.gmra.mxu0 %v1495
    %v1895 = vpop.f32.mrf.mxu0
    %v1896 = vadd.f32 %v1882, %v1895
    %v1897 = vpop.f32.mrf.mxu0
    %v1898 = vadd.f32 %v1884, %v1897
    %1899 = vdwg.mxu0
    %1900 = vmatpush.bf16.msra.mxu0 %v1371
    %1901 = vmatpush.bf16.msra.mxu0 %v1367
    %1902 = vmatpush.bf16.msra.mxu0 %v1363
    %1903 = vmatpush.bf16.msra.mxu0 %v1359
    %1904 = vmatpush.bf16.msra.mxu0 %v1355
    %1905 = vmatpush.bf16.msra.mxu0 %v1351
    %1906 = vmatpush.bf16.msra.mxu0 %v1347
    %1907 = vmatpush.bf16.msra.mxu0 %v1343
    %1908 = vmatmul.bf16.gmra.mxu0 %v1496
    %v1909 = vpop.f32.mrf.mxu0
    %v1910 = vadd.f32 %v1896, %v1909
    %v1911 = vpop.f32.mrf.mxu0
    %v1912 = vadd.f32 %v1898, %v1911
    %1913 = vdwg.mxu0
    %1914 = vmatpush.bf16.msra.mxu0 %v1403
    %1915 = vmatpush.bf16.msra.mxu0 %v1399
    %1916 = vmatpush.bf16.msra.mxu0 %v1395
    %1917 = vmatpush.bf16.msra.mxu0 %v1391
    %1918 = vmatpush.bf16.msra.mxu0 %v1387
    %1919 = vmatpush.bf16.msra.mxu0 %v1383
    %1920 = vmatpush.bf16.msra.mxu0 %v1379
    %1921 = vmatpush.bf16.msra.mxu0 %v1375
    %1922 = vmatmul.bf16.gmra.mxu0 %v1497
    %v1923 = vpop.f32.mrf.mxu0
    %v1924 = vadd.f32 %v1910, %v1923
    %v1925 = vpop.f32.mrf.mxu0
    %v1926 = vadd.f32 %v1912, %v1925
    %1927 = vdwg.mxu0
    %1928 = vmatpush.bf16.msra.mxu0 %v1435
    %1929 = vmatpush.bf16.msra.mxu0 %v1431
    %1930 = vmatpush.bf16.msra.mxu0 %v1427
    %1931 = vmatpush.bf16.msra.mxu0 %v1423
    %1932 = vmatpush.bf16.msra.mxu0 %v1419
    %1933 = vmatpush.bf16.msra.mxu0 %v1415
    %1934 = vmatpush.bf16.msra.mxu0 %v1411
    %1935 = vmatpush.bf16.msra.mxu0 %v1407
    %1936 = vmatmul.bf16.gmra.mxu0 %v1498
    %v1937 = vpop.f32.mrf.mxu0
    %v1938 = vadd.f32 %v1924, %v1937
    %v1939 = vpop.f32.mrf.mxu0
    %v1940 = vadd.f32 %v1926, %v1939
    %1941 = vdwg.mxu0
    %1942 = vmatpush.bf16.msra.mxu0 %v1467
    %1943 = vmatpush.bf16.msra.mxu0 %v1463
    %1944 = vmatpush.bf16.msra.mxu0 %v1459
    %1945 = vmatpush.bf16.msra.mxu0 %v1455
    %1946 = vmatpush.bf16.msra.mxu0 %v1451
    %1947 = vmatpush.bf16.msra.mxu0 %v1447
    %1948 = vmatpush.bf16.msra.mxu0 %v1443
    %1949 = vmatpush.bf16.msra.mxu0 %v1439
    %1950 = vmatmul.bf16.gmra.mxu0 %v1499
    %v1951 = vpop.f32.mrf.mxu0
    %v1952 = vadd.f32 %v1938, %v1951
    %v1953 = vpop.f32.mrf.mxu0
    %v1954 = vadd.f32 %v1940, %v1953
    %1955 = vdwg.mxu0
    %v1956 = vld [vmem:[%s4] ss:$2 sm:$0xf]
    %v1958 = vperm.slane %v1956, 0
    %v1959 = vperm.slane %v1956, 1
    %v1960 = vperm.slane %v1956, 2
    %v1961 = vperm.slane %v1956, 3
    %v1966 = vmul.f32 %v1616, %v1958
    %v1967 = vmul.f32 %v1728, %v1959
    %v1968 = vmul.f32 %v1840, %v1960
    %v1969 = vmul.f32 %v1952, %v1961
    %v1970 = vmul.f32 %v1618, %v1958
    %v1971 = vmul.f32 %v1730, %v1959
    %v1972 = vmul.f32 %v1842, %v1960
    %v1973 = vmul.f32 %v1954, %v1961
    %s1974 = scalar_lea.vmem %s4, 1
    %v1975 = vld [vmem:[%s1974] ss:$2 sm:$0xf]
    %v1977 = vperm.slane %v1975, 0
    %v1978 = vperm.slane %v1975, 1
    %v1979 = vperm.slane %v1975, 2
    %v1980 = vperm.slane %v1975, 3
    %v1985 = vadd.f32 %v1966, %v1977
    %v1986 = vadd.f32 %v1967, %v1978
    %v1987 = vadd.f32 %v1968, %v1979
    %v1988 = vadd.f32 %v1969, %v1980
    %v1989 = vadd.f32 %v1970, %v1977
    %v1990 = vadd.f32 %v1971, %v1978
    %v1991 = vadd.f32 %v1972, %v1979
    %v1992 = vadd.f32 %v1973, %v1980
    %vm1993 = vcmp.ge.f32.partialorder %v1985, 0.0
    %vm1994 = vcmp.ge.f32.partialorder %v1986, 0.0
    %vm1995 = vcmp.ge.f32.partialorder %v1987, 0.0
    %vm1996 = vcmp.ge.f32.partialorder %v1988, 0.0
    %vm1997 = vcmp.ge.f32.partialorder %v1989, 0.0
    %vm1998 = vcmp.ge.f32.partialorder %v1990, 0.0
    %vm1999 = vcmp.ge.f32.partialorder %v1991, 0.0
    %vm2000 = vcmp.ge.f32.partialorder %v1992, 0.0
    %v2001 = vmul.f32 %v1985, 0.2
    %v2002 = vmul.f32 %v1986, 0.2
    %v2003 = vmul.f32 %v1987, 0.2
    %v2004 = vmul.f32 %v1988, 0.2
    %v2005 = vmul.f32 %v1989, 0.2
    %v2006 = vmul.f32 %v1990, 0.2
    %v2007 = vmul.f32 %v1991, 0.2
    %v2008 = vmul.f32 %v1992, 0.2
    %v2009 = vsel %vm1993, %v1985, %v2001
    %v2010 = vsel %vm1994, %v1986, %v2002
    %v2011 = vsel %vm1995, %v1987, %v2003
    %v2012 = vsel %vm1996, %v1988, %v2004
    %v2013 = vsel %vm1997, %v1989, %v2005
    %v2014 = vsel %vm1998, %v1990, %v2006
    %v2015 = vsel %vm1999, %v1991, %v2007
    %v2016 = vsel %vm2000, %v1992, %v2008
    %v2017 = vpack.c.bf16 %v2013, %v2009
    %v2018 = vpack.c.bf16 %v2014, %v2010
    %v2019 = vpack.c.bf16 %v2015, %v2011
    %v2020 = vpack.c.bf16 %v2016, %v2012
    %v2021 = vld [vmem:[%s2] sm:$0xff]
    %v2022 = vld [vmem:[%s2 + $0x8] sm:$0xff]
    %v2023 = vld [vmem:[%s2 + $0x10] sm:$0xff]
    %v2024 = vld [vmem:[%s2 + $0x18] sm:$0xff]
    %v2025 = vld [vmem:[%s2 + $0x20] sm:$0xff]
    %v2026 = vld [vmem:[%s2 + $0x28] sm:$0xff]
    %v2027 = vld [vmem:[%s2 + $0x30] sm:$0xff]
    %v2028 = vld [vmem:[%s2 + $0x38] sm:$0xff]
    %v2029 = vld [vmem:[%s2 + $0x40] sm:$0xff]
    %v2030 = vld [vmem:[%s2 + $0x48] sm:$0xff]
    %v2031 = vld [vmem:[%s2 + $0x50] sm:$0xff]
    %v2032 = vld [vmem:[%s2 + $0x58] sm:$0xff]
    %v2033 = vld [vmem:[%s2 + $0x60] sm:$0xff]
    %v2034 = vld [vmem:[%s2 + $0x68] sm:$0xff]
    %v2035 = vld [vmem:[%s2 + $0x70] sm:$0xff]
    %v2036 = vld [vmem:[%s2 + $0x78] sm:$0xff]
    %v2037 = vld [vmem:[%s2 + $0x80] sm:$0xff]
    %v2038 = vld [vmem:[%s2 + $0x88] sm:$0xff]
    %v2039 = vld [vmem:[%s2 + $0x90] sm:$0xff]
    %v2040 = vld [vmem:[%s2 + $0x98] sm:$0xff]
    %v2041 = vld [vmem:[%s2 + $0xa0] sm:$0xff]
    %v2042 = vld [vmem:[%s2 + $0xa8] sm:$0xff]
    %v2043 = vld [vmem:[%s2 + $0xb0] sm:$0xff]
    %v2044 = vld [vmem:[%s2 + $0xb8] sm:$0xff]
    %v2045 = vld [vmem:[%s2 + $0xc0] sm:$0xff]
    %v2046 = vld [vmem:[%s2 + $0xc8] sm:$0xff]
    %v2047 = vld [vmem:[%s2 + $0xd0] sm:$0xff]
    %v2048 = vld [vmem:[%s2 + $0xd8] sm:$0xff]
    %v2049 = vld [vmem:[%s2 + $0xe0] sm:$0xff]
    %v2050 = vld [vmem:[%s2 + $0xe8] sm:$0xff]
    %v2051 = vld [vmem:[%s2 + $0xf0] sm:$0xff]
    %v2052 = vld [vmem:[%s2 + $0xf8] sm:$0xff]
    %v2053 = vunpack.c.0.s8 %v2021
    %v2054 = vunpack.c.0.s8 %v2022
    %v2055 = vunpack.c.1.s8 %v2021
    %v2056 = vunpack.c.1.s8 %v2022
    %v2057 = vunpack.c.2.s8 %v2021
    %v2058 = vunpack.c.2.s8 %v2022
    %v2059 = vunpack.c.3.s8 %v2021
    %v2060 = vunpack.c.3.s8 %v2022
    %v2061 = vunpack.c.0.s8 %v2023
    %v2062 = vunpack.c.0.s8 %v2024
    %v2063 = vunpack.c.1.s8 %v2023
    %v2064 = vunpack.c.1.s8 %v2024
    %v2065 = vunpack.c.2.s8 %v2023
    %v2066 = vunpack.c.2.s8 %v2024
    %v2067 = vunpack.c.3.s8 %v2023
    %v2068 = vunpack.c.3.s8 %v2024
    %v2069 = vunpack.c.0.s8 %v2025
    %v2070 = vunpack.c.0.s8 %v2026
    %v2071 = vunpack.c.1.s8 %v2025
    %v2072 = vunpack.c.1.s8 %v2026
    %v2073 = vunpack.c.2.s8 %v2025
    %v2074 = vunpack.c.2.s8 %v2026
    %v2075 = vunpack.c.3.s8 %v2025
    %v2076 = vunpack.c.3.s8 %v2026
    %v2077 = vunpack.c.0.s8 %v2027
    %v2078 = vunpack.c.0.s8 %v2028
    %v2079 = vunpack.c.1.s8 %v2027
    %v2080 = vunpack.c.1.s8 %v2028
    %v2081 = vunpack.c.2.s8 %v2027
    %v2082 = vunpack.c.2.s8 %v2028
    %v2083 = vunpack.c.3.s8 %v2027
    %v2084 = vunpack.c.3.s8 %v2028
    %v2085 = vunpack.c.0.s8 %v2029
    %v2086 = vunpack.c.0.s8 %v2030
    %v2087 = vunpack.c.1.s8 %v2029
    %v2088 = vunpack.c.1.s8 %v2030
    %v2089 = vunpack.c.2.s8 %v2029
    %v2090 = vunpack.c.2.s8 %v2030
    %v2091 = vunpack.c.3.s8 %v2029
    %v2092 = vunpack.c.3.s8 %v2030
    %v2093 = vunpack.c.0.s8 %v2031
    %v2094 = vunpack.c.0.s8 %v2032
    %v2095 = vunpack.c.1.s8 %v2031
    %v2096 = vunpack.c.1.s8 %v2032
    %v2097 = vunpack.c.2.s8 %v2031
    %v2098 = vunpack.c.2.s8 %v2032
    %v2099 = vunpack.c.3.s8 %v2031
    %v2100 = vunpack.c.3.s8 %v2032
    %v2101 = vunpack.c.0.s8 %v2033
    %v2102 = vunpack.c.0.s8 %v2034
    %v2103 = vunpack.c.1.s8 %v2033
    %v2104 = vunpack.c.1.s8 %v2034
    %v2105 = vunpack.c.2.s8 %v2033
    %v2106 = vunpack.c.2.s8 %v2034
    %v2107 = vunpack.c.3.s8 %v2033
    %v2108 = vunpack.c.3.s8 %v2034
    %v2109 = vunpack.c.0.s8 %v2035
    %v2110 = vunpack.c.0.s8 %v2036
    %v2111 = vunpack.c.1.s8 %v2035
    %v2112 = vunpack.c.1.s8 %v2036
    %v2113 = vunpack.c.2.s8 %v2035
    %v2114 = vunpack.c.2.s8 %v2036
    %v2115 = vunpack.c.3.s8 %v2035
    %v2116 = vunpack.c.3.s8 %v2036
    %v2117 = vunpack.c.0.s8 %v2037
    %v2118 = vunpack.c.0.s8 %v2038
    %v2119 = vunpack.c.1.s8 %v2037
    %v2120 = vunpack.c.1.s8 %v2038
    %v2121 = vunpack.c.2.s8 %v2037
    %v2122 = vunpack.c.2.s8 %v2038
    %v2123 = vunpack.c.3.s8 %v2037
    %v2124 = vunpack.c.3.s8 %v2038
    %v2125 = vunpack.c.0.s8 %v2039
    %v2126 = vunpack.c.0.s8 %v2040
    %v2127 = vunpack.c.1.s8 %v2039
    %v2128 = vunpack.c.1.s8 %v2040
    %v2129 = vunpack.c.2.s8 %v2039
    %v2130 = vunpack.c.2.s8 %v2040
    %v2131 = vunpack.c.3.s8 %v2039
    %v2132 = vunpack.c.3.s8 %v2040
    %v2133 = vunpack.c.0.s8 %v2041
    %v2134 = vunpack.c.0.s8 %v2042
    %v2135 = vunpack.c.1.s8 %v2041
    %v2136 = vunpack.c.1.s8 %v2042
    %v2137 = vunpack.c.2.s8 %v2041
    %v2138 = vunpack.c.2.s8 %v2042
    %v2139 = vunpack.c.3.s8 %v2041
    %v2140 = vunpack.c.3.s8 %v2042
    %v2141 = vunpack.c.0.s8 %v2043
    %v2142 = vunpack.c.0.s8 %v2044
    %v2143 = vunpack.c.1.s8 %v2043
    %v2144 = vunpack.c.1.s8 %v2044
    %v2145 = vunpack.c.2.s8 %v2043
    %v2146 = vunpack.c.2.s8 %v2044
    %v2147 = vunpack.c.3.s8 %v2043
    %v2148 = vunpack.c.3.s8 %v2044
    %v2149 = vunpack.c.0.s8 %v2045
    %v2150 = vunpack.c.0.s8 %v2046
    %v2151 = vunpack.c.1.s8 %v2045
    %v2152 = vunpack.c.1.s8 %v2046
    %v2153 = vunpack.c.2.s8 %v2045
    %v2154 = vunpack.c.2.s8 %v2046
    %v2155 = vunpack.c.3.s8 %v2045
    %v2156 = vunpack.c.3.s8 %v2046
    %v2157 = vunpack.c.0.s8 %v2047
    %v2158 = vunpack.c.0.s8 %v2048
    %v2159 = vunpack.c.1.s8 %v2047
    %v2160 = vunpack.c.1.s8 %v2048
    %v2161 = vunpack.c.2.s8 %v2047
    %v2162 = vunpack.c.2.s8 %v2048
    %v2163 = vunpack.c.3.s8 %v2047
    %v2164 = vunpack.c.3.s8 %v2048
    %v2165 = vunpack.c.0.s8 %v2049
    %v2166 = vunpack.c.0.s8 %v2050
    %v2167 = vunpack.c.1.s8 %v2049
    %v2168 = vunpack.c.1.s8 %v2050
    %v2169 = vunpack.c.2.s8 %v2049
    %v2170 = vunpack.c.2.s8 %v2050
    %v2171 = vunpack.c.3.s8 %v2049
    %v2172 = vunpack.c.3.s8 %v2050
    %v2173 = vunpack.c.0.s8 %v2051
    %v2174 = vunpack.c.0.s8 %v2052
    %v2175 = vunpack.c.1.s8 %v2051
    %v2176 = vunpack.c.1.s8 %v2052
    %v2177 = vunpack.c.2.s8 %v2051
    %v2178 = vunpack.c.2.s8 %v2052
    %v2179 = vunpack.c.3.s8 %v2051
    %v2180 = vunpack.c.3.s8 %v2052
    %v2181 = vcvt.s32.f32 %v2053
    %v2182 = vcvt.s32.f32 %v2054
    %v2183 = vcvt.s32.f32 %v2055
    %v2184 = vcvt.s32.f32 %v2056
    %v2185 = vcvt.s32.f32 %v2057
    %v2186 = vcvt.s32.f32 %v2058
    %v2187 = vcvt.s32.f32 %v2059
    %v2188 = vcvt.s32.f32 %v2060
    %v2189 = vcvt.s32.f32 %v2061
    %v2190 = vcvt.s32.f32 %v2062
    %v2191 = vcvt.s32.f32 %v2063
    %v2192 = vcvt.s32.f32 %v2064
    %v2193 = vcvt.s32.f32 %v2065
    %v2194 = vcvt.s32.f32 %v2066
    %v2195 = vcvt.s32.f32 %v2067
    %v2196 = vcvt.s32.f32 %v2068
    %v2197 = vcvt.s32.f32 %v2069
    %v2198 = vcvt.s32.f32 %v2070
    %v2199 = vcvt.s32.f32 %v2071
    %v2200 = vcvt.s32.f32 %v2072
    %v2201 = vcvt.s32.f32 %v2073
    %v2202 = vcvt.s32.f32 %v2074
    %v2203 = vcvt.s32.f32 %v2075
    %v2204 = vcvt.s32.f32 %v2076
    %v2205 = vcvt.s32.f32 %v2077
    %v2206 = vcvt.s32.f32 %v2078
    %v2207 = vcvt.s32.f32 %v2079
    %v2208 = vcvt.s32.f32 %v2080
    %v2209 = vcvt.s32.f32 %v2081
    %v2210 = vcvt.s32.f32 %v2082
    %v2211 = vcvt.s32.f32 %v2083
    %v2212 = vcvt.s32.f32 %v2084
    %v2213 = vcvt.s32.f32 %v2085
    %v2214 = vcvt.s32.f32 %v2086
    %v2215 = vcvt.s32.f32 %v2087
    %v2216 = vcvt.s32.f32 %v2088
    %v2217 = vcvt.s32.f32 %v2089
    %v2218 = vcvt.s32.f32 %v2090
    %v2219 = vcvt.s32.f32 %v2091
    %v2220 = vcvt.s32.f32 %v2092
    %v2221 = vcvt.s32.f32 %v2093
    %v2222 = vcvt.s32.f32 %v2094
    %v2223 = vcvt.s32.f32 %v2095
    %v2224 = vcvt.s32.f32 %v2096
    %v2225 = vcvt.s32.f32 %v2097
    %v2226 = vcvt.s32.f32 %v2098
    %v2227 = vcvt.s32.f32 %v2099
    %v2228 = vcvt.s32.f32 %v2100
    %v2229 = vcvt.s32.f32 %v2101
    %v2230 = vcvt.s32.f32 %v2102
    %v2231 = vcvt.s32.f32 %v2103
    %v2232 = vcvt.s32.f32 %v2104
    %v2233 = vcvt.s32.f32 %v2105
    %v2234 = vcvt.s32.f32 %v2106
    %v2235 = vcvt.s32.f32 %v2107
    %v2236 = vcvt.s32.f32 %v2108
    %v2237 = vcvt.s32.f32 %v2109
    %v2238 = vcvt.s32.f32 %v2110
    %v2239 = vcvt.s32.f32 %v2111
    %v2240 = vcvt.s32.f32 %v2112
    %v2241 = vcvt.s32.f32 %v2113
    %v2242 = vcvt.s32.f32 %v2114
    %v2243 = vcvt.s32.f32 %v2115
    %v2244 = vcvt.s32.f32 %v2116
    %v2245 = vcvt.s32.f32 %v2117
    %v2246 = vcvt.s32.f32 %v2118
    %v2247 = vcvt.s32.f32 %v2119
    %v2248 = vcvt.s32.f32 %v2120
    %v2249 = vcvt.s32.f32 %v2121
    %v2250 = vcvt.s32.f32 %v2122
    %v2251 = vcvt.s32.f32 %v2123
    %v2252 = vcvt.s32.f32 %v2124
    %v2253 = vcvt.s32.f32 %v2125
    %v2254 = vcvt.s32.f32 %v2126
    %v2255 = vcvt.s32.f32 %v2127
    %v2256 = vcvt.s32.f32 %v2128
    %v2257 = vcvt.s32.f32 %v2129
    %v2258 = vcvt.s32.f32 %v2130
    %v2259 = vcvt.s32.f32 %v2131
    %v2260 = vcvt.s32.f32 %v2132
    %v2261 = vcvt.s32.f32 %v2133
    %v2262 = vcvt.s32.f32 %v2134
    %v2263 = vcvt.s32.f32 %v2135
    %v2264 = vcvt.s32.f32 %v2136
    %v2265 = vcvt.s32.f32 %v2137
    %v2266 = vcvt.s32.f32 %v2138
    %v2267 = vcvt.s32.f32 %v2139
    %v2268 = vcvt.s32.f32 %v2140
    %v2269 = vcvt.s32.f32 %v2141
    %v2270 = vcvt.s32.f32 %v2142
    %v2271 = vcvt.s32.f32 %v2143
    %v2272 = vcvt.s32.f32 %v2144
    %v2273 = vcvt.s32.f32 %v2145
    %v2274 = vcvt.s32.f32 %v2146
    %v2275 = vcvt.s32.f32 %v2147
    %v2276 = vcvt.s32.f32 %v2148
    %v2277 = vcvt.s32.f32 %v2149
    %v2278 = vcvt.s32.f32 %v2150
    %v2279 = vcvt.s32.f32 %v2151
    %v2280 = vcvt.s32.f32 %v2152
    %v2281 = vcvt.s32.f32 %v2153
    %v2282 = vcvt.s32.f32 %v2154
    %v2283 = vcvt.s32.f32 %v2155
    %v2284 = vcvt.s32.f32 %v2156
    %v2285 = vcvt.s32.f32 %v2157
    %v2286 = vcvt.s32.f32 %v2158
    %v2287 = vcvt.s32.f32 %v2159
    %v2288 = vcvt.s32.f32 %v2160
    %v2289 = vcvt.s32.f32 %v2161
    %v2290 = vcvt.s32.f32 %v2162
    %v2291 = vcvt.s32.f32 %v2163
    %v2292 = vcvt.s32.f32 %v2164
    %v2293 = vcvt.s32.f32 %v2165
    %v2294 = vcvt.s32.f32 %v2166
    %v2295 = vcvt.s32.f32 %v2167
    %v2296 = vcvt.s32.f32 %v2168
    %v2297 = vcvt.s32.f32 %v2169
    %v2298 = vcvt.s32.f32 %v2170
    %v2299 = vcvt.s32.f32 %v2171
    %v2300 = vcvt.s32.f32 %v2172
    %v2301 = vcvt.s32.f32 %v2173
    %v2302 = vcvt.s32.f32 %v2174
    %v2303 = vcvt.s32.f32 %v2175
    %v2304 = vcvt.s32.f32 %v2176
    %v2305 = vcvt.s32.f32 %v2177
    %v2306 = vcvt.s32.f32 %v2178
    %v2307 = vcvt.s32.f32 %v2179
    %v2308 = vcvt.s32.f32 %v2180
    %v2309 = vpack.c.bf16 %v2183, %v2181
    %v2310 = vpack.c.bf16 %v2184, %v2182
    %v2311 = vpack.c.bf16 %v2187, %v2185
    %v2312 = vpack.c.bf16 %v2188, %v2186
    %v2313 = vpack.c.bf16 %v2191, %v2189
    %v2314 = vpack.c.bf16 %v2192, %v2190
    %v2315 = vpack.c.bf16 %v2195, %v2193
    %v2316 = vpack.c.bf16 %v2196, %v2194
    %v2317 = vpack.c.bf16 %v2199, %v2197
    %v2318 = vpack.c.bf16 %v2200, %v2198
    %v2319 = vpack.c.bf16 %v2203, %v2201
    %v2320 = vpack.c.bf16 %v2204, %v2202
    %v2321 = vpack.c.bf16 %v2207, %v2205
    %v2322 = vpack.c.bf16 %v2208, %v2206
    %v2323 = vpack.c.bf16 %v2211, %v2209
    %v2324 = vpack.c.bf16 %v2212, %v2210
    %v2325 = vpack.c.bf16 %v2215, %v2213
    %v2326 = vpack.c.bf16 %v2216, %v2214
    %v2327 = vpack.c.bf16 %v2219, %v2217
    %v2328 = vpack.c.bf16 %v2220, %v2218
    %v2329 = vpack.c.bf16 %v2223, %v2221
    %v2330 = vpack.c.bf16 %v2224, %v2222
    %v2331 = vpack.c.bf16 %v2227, %v2225
    %v2332 = vpack.c.bf16 %v2228, %v2226
    %v2333 = vpack.c.bf16 %v2231, %v2229
    %v2334 = vpack.c.bf16 %v2232, %v2230
    %v2335 = vpack.c.bf16 %v2235, %v2233
    %v2336 = vpack.c.bf16 %v2236, %v2234
    %v2337 = vpack.c.bf16 %v2239, %v2237
    %v2338 = vpack.c.bf16 %v2240, %v2238
    %v2339 = vpack.c.bf16 %v2243, %v2241
    %v2340 = vpack.c.bf16 %v2244, %v2242
    %v2341 = vpack.c.bf16 %v2247, %v2245
    %v2342 = vpack.c.bf16 %v2248, %v2246
    %v2343 = vpack.c.bf16 %v2251, %v2249
    %v2344 = vpack.c.bf16 %v2252, %v2250
    %v2345 = vpack.c.bf16 %v2255, %v2253
    %v2346 = vpack.c.bf16 %v2256, %v2254
    %v2347 = vpack.c.bf16 %v2259, %v2257
    %v2348 = vpack.c.bf16 %v2260, %v2258
    %v2349 = vpack.c.bf16 %v2263, %v2261
    %v2350 = vpack.c.bf16 %v2264, %v2262
    %v2351 = vpack.c.bf16 %v2267, %v2265
    %v2352 = vpack.c.bf16 %v2268, %v2266
    %v2353 = vpack.c.bf16 %v2271, %v2269
    %v2354 = vpack.c.bf16 %v2272, %v2270
    %v2355 = vpack.c.bf16 %v2275, %v2273
    %v2356 = vpack.c.bf16 %v2276, %v2274
    %v2357 = vpack.c.bf16 %v2279, %v2277
    %v2358 = vpack.c.bf16 %v2280, %v2278
    %v2359 = vpack.c.bf16 %v2283, %v2281
    %v2360 = vpack.c.bf16 %v2284, %v2282
    %v2361 = vpack.c.bf16 %v2287, %v2285
    %v2362 = vpack.c.bf16 %v2288, %v2286
    %v2363 = vpack.c.bf16 %v2291, %v2289
    %v2364 = vpack.c.bf16 %v2292, %v2290
    %v2365 = vpack.c.bf16 %v2295, %v2293
    %v2366 = vpack.c.bf16 %v2296, %v2294
    %v2367 = vpack.c.bf16 %v2299, %v2297
    %v2368 = vpack.c.bf16 %v2300, %v2298
    %v2369 = vpack.c.bf16 %v2303, %v2301
    %v2370 = vpack.c.bf16 %v2304, %v2302
    %v2371 = vpack.c.bf16 %v2307, %v2305
    %v2372 = vpack.c.bf16 %v2308, %v2306
    %2373 = vmatpush.bf16.msra.mxu0 %v2323
    %2374 = vmatpush.bf16.msra.mxu0 %v2321
    %2375 = vmatpush.bf16.msra.mxu0 %v2319
    %2376 = vmatpush.bf16.msra.mxu0 %v2317
    %2377 = vmatpush.bf16.msra.mxu0 %v2315
    %2378 = vmatpush.bf16.msra.mxu0 %v2313
    %2379 = vmatpush.bf16.msra.mxu0 %v2311
    %2380 = vmatpush.bf16.msra.mxu0 %v2309
    %2381 = vmatmul.bf16.gmra.mxu0 %v2017
    %v2382 = vpop.f32.mrf.mxu0
    %v2383 = vadd.f32 0.0, %v2382
    %v2384 = vpop.f32.mrf.mxu0
    %v2385 = vadd.f32 0.0, %v2384
    %2386 = vdwg.mxu0
    %2387 = vmatpush.bf16.msra.mxu0 %v2339
    %2388 = vmatpush.bf16.msra.mxu0 %v2337
    %2389 = vmatpush.bf16.msra.mxu0 %v2335
    %2390 = vmatpush.bf16.msra.mxu0 %v2333
    %2391 = vmatpush.bf16.msra.mxu0 %v2331
    %2392 = vmatpush.bf16.msra.mxu0 %v2329
    %2393 = vmatpush.bf16.msra.mxu0 %v2327
    %2394 = vmatpush.bf16.msra.mxu0 %v2325
    %2395 = vmatmul.bf16.gmra.mxu0 %v2018
    %v2396 = vpop.f32.mrf.mxu0
    %v2397 = vadd.f32 %v2383, %v2396
    %v2398 = vpop.f32.mrf.mxu0
    %v2399 = vadd.f32 %v2385, %v2398
    %2400 = vdwg.mxu0
    %2401 = vmatpush.bf16.msra.mxu0 %v2355
    %2402 = vmatpush.bf16.msra.mxu0 %v2353
    %2403 = vmatpush.bf16.msra.mxu0 %v2351
    %2404 = vmatpush.bf16.msra.mxu0 %v2349
    %2405 = vmatpush.bf16.msra.mxu0 %v2347
    %2406 = vmatpush.bf16.msra.mxu0 %v2345
    %2407 = vmatpush.bf16.msra.mxu0 %v2343
    %2408 = vmatpush.bf16.msra.mxu0 %v2341
    %2409 = vmatmul.bf16.gmra.mxu0 %v2019
    %v2410 = vpop.f32.mrf.mxu0
    %v2411 = vadd.f32 %v2397, %v2410
    %v2412 = vpop.f32.mrf.mxu0
    %v2413 = vadd.f32 %v2399, %v2412
    %2414 = vdwg.mxu0
    %2415 = vmatpush.bf16.msra.mxu0 %v2371
    %2416 = vmatpush.bf16.msra.mxu0 %v2369
    %2417 = vmatpush.bf16.msra.mxu0 %v2367
    %2418 = vmatpush.bf16.msra.mxu0 %v2365
    %2419 = vmatpush.bf16.msra.mxu0 %v2363
    %2420 = vmatpush.bf16.msra.mxu0 %v2361
    %2421 = vmatpush.bf16.msra.mxu0 %v2359
    %2422 = vmatpush.bf16.msra.mxu0 %v2357
    %2423 = vmatmul.bf16.gmra.mxu0 %v2020
    %v2424 = vpop.f32.mrf.mxu0
    %v2425 = vadd.f32 %v2411, %v2424
    %v2426 = vpop.f32.mrf.mxu0
    %v2427 = vadd.f32 %v2413, %v2426
    %2428 = vdwg.mxu0
    %2429 = vmatpush.bf16.msra.mxu0 %v2324
    %2430 = vmatpush.bf16.msra.mxu0 %v2322
    %2431 = vmatpush.bf16.msra.mxu0 %v2320
    %2432 = vmatpush.bf16.msra.mxu0 %v2318
    %2433 = vmatpush.bf16.msra.mxu0 %v2316
    %2434 = vmatpush.bf16.msra.mxu0 %v2314
    %2435 = vmatpush.bf16.msra.mxu0 %v2312
    %2436 = vmatpush.bf16.msra.mxu0 %v2310
    %2437 = vmatmul.bf16.gmra.mxu0 %v2017
    %v2438 = vpop.f32.mrf.mxu0
    %v2439 = vadd.f32 0.0, %v2438
    %v2440 = vpop.f32.mrf.mxu0
    %v2441 = vadd.f32 0.0, %v2440
    %2442 = vdwg.mxu0
    %2443 = vmatpush.bf16.msra.mxu0 %v2340
    %2444 = vmatpush.bf16.msra.mxu0 %v2338
    %2445 = vmatpush.bf16.msra.mxu0 %v2336
    %2446 = vmatpush.bf16.msra.mxu0 %v2334
    %2447 = vmatpush.bf16.msra.mxu0 %v2332
    %2448 = vmatpush.bf16.msra.mxu0 %v2330
    %2449 = vmatpush.bf16.msra.mxu0 %v2328
    %2450 = vmatpush.bf16.msra.mxu0 %v2326
    %2451 = vmatmul.bf16.gmra.mxu0 %v2018
    %v2452 = vpop.f32.mrf.mxu0
    %v2453 = vadd.f32 %v2439, %v2452
    %v2454 = vpop.f32.mrf.mxu0
    %v2455 = vadd.f32 %v2441, %v2454
    %2456 = vdwg.mxu0
    %2457 = vmatpush.bf16.msra.mxu0 %v2356
    %2458 = vmatpush.bf16.msra.mxu0 %v2354
    %2459 = vmatpush.bf16.msra.mxu0 %v2352
    %2460 = vmatpush.bf16.msra.mxu0 %v2350
    %2461 = vmatpush.bf16.msra.mxu0 %v2348
    %2462 = vmatpush.bf16.msra.mxu0 %v2346
    %2463 = vmatpush.bf16.msra.mxu0 %v2344
    %2464 = vmatpush.bf16.msra.mxu0 %v2342
    %2465 = vmatmul.bf16.gmra.mxu0 %v2019
    %v2466 = vpop.f32.mrf.mxu0
    %v2467 = vadd.f32 %v2453, %v2466
    %v2468 = vpop.f32.mrf.mxu0
    %v2469 = vadd.f32 %v2455, %v2468
    %2470 = vdwg.mxu0
    %2471 = vmatpush.bf16.msra.mxu0 %v2372
    %2472 = vmatpush.bf16.msra.mxu0 %v2370
    %2473 = vmatpush.bf16.msra.mxu0 %v2368
    %2474 = vmatpush.bf16.msra.mxu0 %v2366
    %2475 = vmatpush.bf16.msra.mxu0 %v2364
    %2476 = vmatpush.bf16.msra.mxu0 %v2362
    %2477 = vmatpush.bf16.msra.mxu0 %v2360
    %2478 = vmatpush.bf16.msra.mxu0 %v2358
    %2479 = vmatmul.bf16.gmra.mxu0 %v2020
    %v2480 = vpop.f32.mrf.mxu0
    %v2481 = vadd.f32 %v2467, %v2480
    %v2482 = vpop.f32.mrf.mxu0
    %v2483 = vadd.f32 %v2469, %v2482
    %2484 = vdwg.mxu0
    %s2485 = scalar_lea.vmem %s4, 8
    %v2486 = vld [vmem:[%s2485] ss:$2 sm:$0x3]
    %v2488 = vperm.slane %v2486, 0
    %v2489 = vperm.slane %v2486, 1
    %v2492 = vmul.f32 %v2425, %v2488
    %v2493 = vmul.f32 %v2481, %v2489
    %v2494 = vmul.f32 %v2427, %v2488
    %v2495 = vmul.f32 %v2483, %v2489
    %s2496 = scalar_lea.vmem %s4, 9
    %v2497 = vld [vmem:[%s2496] ss:$2 sm:$0x3]
    %v2499 = vperm.slane %v2497, 0
    %v2500 = vperm.slane %v2497, 1
    %v2503 = vadd.f32 %v2492, %v2499
    %v2504 = vadd.f32 %v2493, %v2500
    %v2505 = vadd.f32 %v2494, %v2499
    %v2506 = vadd.f32 %v2495, %v2500
    %vm2507 = vcmp.ge.f32.partialorder %v2503, 0.0
    %vm2508 = vcmp.ge.f32.partialorder %v2504, 0.0
    %vm2509 = vcmp.ge.f32.partialorder %v2505, 0.0
    %vm2510 = vcmp.ge.f32.partialorder %v2506, 0.0
    %v2511 = vmul.f32 %v2503, 0.2
    %v2512 = vmul.f32 %v2504, 0.2
    %v2513 = vmul.f32 %v2505, 0.2
    %v2514 = vmul.f32 %v2506, 0.2
    %v2515 = vsel %vm2507, %v2503, %v2511
    %v2516 = vsel %vm2508, %v2504, %v2512
    %v2517 = vsel %vm2509, %v2505, %v2513
    %v2518 = vsel %vm2510, %v2506, %v2514
    %v2519 = vpack.c.bf16 %v2517, %v2515
    %v2520 = vpack.c.bf16 %v2518, %v2516
    %v2521 = vld [vmem:[#allocation4] sm:$0xf]
    %v2522 = vld [vmem:[#allocation4 + $0x4] sm:$0xf]
    %v2523 = vld [vmem:[#allocation4 + $0x8] sm:$0xf]
    %v2524 = vld [vmem:[#allocation4 + $0xc] sm:$0xf]
    %v2525 = vld [vmem:[#allocation4 + $0x10] sm:$0xf]
    %v2526 = vld [vmem:[#allocation4 + $0x14] sm:$0xf]
    %v2527 = vld [vmem:[#allocation4 + $0x18] sm:$0xf]
    %v2528 = vld [vmem:[#allocation4 + $0x1c] sm:$0xf]
    %v2529 = vld [vmem:[#allocation4 + $0x20] sm:$0xf]
    %v2530 = vld [vmem:[#allocation4 + $0x24] sm:$0xf]
    %v2531 = vld [vmem:[#allocation4 + $0x28] sm:$0xf]
    %v2532 = vld [vmem:[#allocation4 + $0x2c] sm:$0xf]
    %v2533 = vld [vmem:[#allocation4 + $0x30] sm:$0xf]
    %v2534 = vld [vmem:[#allocation4 + $0x34] sm:$0xf]
    %v2535 = vld [vmem:[#allocation4 + $0x38] sm:$0xf]
    %v2536 = vld [vmem:[#allocation4 + $0x3c] sm:$0xf]
    %v2537 = vld [vmem:[#allocation4 + $0x40] sm:$0xf]
    %v2538 = vld [vmem:[#allocation4 + $0x44] sm:$0xf]
    %v2539 = vld [vmem:[#allocation4 + $0x48] sm:$0xf]
    %v2540 = vld [vmem:[#allocation4 + $0x4c] sm:$0xf]
    %v2541 = vld [vmem:[#allocation4 + $0x50] sm:$0xf]
    %v2542 = vld [vmem:[#allocation4 + $0x54] sm:$0xf]
    %v2543 = vld [vmem:[#allocation4 + $0x58] sm:$0xf]
    %v2544 = vld [vmem:[#allocation4 + $0x5c] sm:$0xf]
    %v2545 = vld [vmem:[#allocation4 + $0x60] sm:$0xf]
    %v2546 = vld [vmem:[#allocation4 + $0x64] sm:$0xf]
    %v2547 = vld [vmem:[#allocation4 + $0x68] sm:$0xf]
    %v2548 = vld [vmem:[#allocation4 + $0x6c] sm:$0xf]
    %v2549 = vld [vmem:[#allocation4 + $0x70] sm:$0xf]
    %v2550 = vld [vmem:[#allocation4 + $0x74] sm:$0xf]
    %v2551 = vld [vmem:[#allocation4 + $0x78] sm:$0xf]
    %v2552 = vld [vmem:[#allocation4 + $0x7c] sm:$0xf]
    %v2553 = vld [vmem:[%s4 + $0xd] sm:$0x1]
    %v2554 = vperm.slane %v2553, 0
    %v2587 = vunpack.c.l.b16 %v2521
    %v2588 = vunpack.c.l.b16 %v2522
    %v2589 = vunpack.c.l.b16 %v2523
    %v2590 = vunpack.c.l.b16 %v2524
    %v2591 = vunpack.c.l.b16 %v2525
    %v2592 = vunpack.c.l.b16 %v2526
    %v2593 = vunpack.c.l.b16 %v2527
    %v2594 = vunpack.c.l.b16 %v2528
    %v2595 = vunpack.c.l.b16 %v2529
    %v2596 = vunpack.c.l.b16 %v2530
    %v2597 = vunpack.c.l.b16 %v2531
    %v2598 = vunpack.c.l.b16 %v2532
    %v2599 = vunpack.c.l.b16 %v2533
    %v2600 = vunpack.c.l.b16 %v2534
    %v2601 = vunpack.c.l.b16 %v2535
    %v2602 = vunpack.c.l.b16 %v2536
    %v2603 = vunpack.c.l.b16 %v2537
    %v2604 = vunpack.c.l.b16 %v2538
    %v2605 = vunpack.c.l.b16 %v2539
    %v2606 = vunpack.c.l.b16 %v2540
    %v2607 = vunpack.c.l.b16 %v2541
    %v2608 = vunpack.c.l.b16 %v2542
    %v2609 = vunpack.c.l.b16 %v2543
    %v2610 = vunpack.c.l.b16 %v2544
    %v2611 = vunpack.c.l.b16 %v2545
    %v2612 = vunpack.c.l.b16 %v2546
    %v2613 = vunpack.c.l.b16 %v2547
    %v2614 = vunpack.c.l.b16 %v2548
    %v2615 = vunpack.c.l.b16 %v2549
    %v2616 = vunpack.c.l.b16 %v2550
    %v2617 = vunpack.c.l.b16 %v2551
    %v2618 = vunpack.c.l.b16 %v2552
    %v2619 = vpack.c.b16 %v2588, %v2587
    %v2620 = vpack.c.b16 %v2590, %v2589
    %v2621 = vpack.c.b16 %v2592, %v2591
    %v2622 = vpack.c.b16 %v2594, %v2593
    %v2623 = vpack.c.b16 %v2596, %v2595
    %v2624 = vpack.c.b16 %v2598, %v2597
    %v2625 = vpack.c.b16 %v2600, %v2599
    %v2626 = vpack.c.b16 %v2602, %v2601
    %v2627 = vpack.c.b16 %v2604, %v2603
    %v2628 = vpack.c.b16 %v2606, %v2605
    %v2629 = vpack.c.b16 %v2608, %v2607
    %v2630 = vpack.c.b16 %v2610, %v2609
    %v2631 = vpack.c.b16 %v2612, %v2611
    %v2632 = vpack.c.b16 %v2614, %v2613
    %v2633 = vpack.c.b16 %v2616, %v2615
    %v2634 = vpack.c.b16 %v2618, %v2617
    %2651 = vmatpush.bf16.msra.mxu0 %v2626
    %2652 = vmatpush.bf16.msra.mxu0 %v2625
    %2653 = vmatpush.bf16.msra.mxu0 %v2624
    %2654 = vmatpush.bf16.msra.mxu0 %v2623
    %2655 = vmatpush.bf16.msra.mxu0 %v2622
    %2656 = vmatpush.bf16.msra.mxu0 %v2621
    %2657 = vmatpush.bf16.msra.mxu0 %v2620
    %2658 = vmatpush.bf16.msra.mxu0 %v2619
    %2659 = vmatmul.bf16.gmra.mxu0 %v2519
    %v2660 = vpop.f32.mrf.mxu0
    %v2661 = vadd.f32 %v2554, %v2660
    %v2662 = vpop.f32.mrf.mxu0
    %v2663 = vadd.f32 %v2554, %v2662
    %2664 = vdwg.mxu0
    %2665 = vmatpush.bf16.msra.mxu0 %v2634
    %2666 = vmatpush.bf16.msra.mxu0 %v2633
    %2667 = vmatpush.bf16.msra.mxu0 %v2632
    %2668 = vmatpush.bf16.msra.mxu0 %v2631
    %2669 = vmatpush.bf16.msra.mxu0 %v2630
    %2670 = vmatpush.bf16.msra.mxu0 %v2629
    %2671 = vmatpush.bf16.msra.mxu0 %v2628
    %2672 = vmatpush.bf16.msra.mxu0 %v2627
    %2673 = vmatmul.bf16.gmra.mxu0 %v2520
    %v2674 = vpop.f32.mrf.mxu0
    %v2675 = vadd.f32 %v2661, %v2674
    %v2676 = vpop.f32.mrf.mxu0
    %v2677 = vadd.f32 %v2663, %v2676
    %2678 = vdwg.mxu0
    %2679 = vst [vmem:[%s5] sm:$0xff] %v2675
    %2680 = vst [vmem:[%s5 + $0x8] sm:$0xff] %v2677
    // Predicated region
    $region30: #{conv_encoder_forward.1} parent=1 // pred_check
      _
    $region31: #{conv_encoder_forward.1} parent=1 // pred_check_branch
      %2682 = sbr.rel (0) target = $region33
    $region32: #{conv_encoder_forward.1} parent=1 // pred_region
      _
    $region33: #{conv_encoder_forward.1} parent=1 // pred_fallthru
      _
    // Predicated region
    $region34: #{conv_encoder_forward.1} parent=1 // pred_check
      _
    $region35: #{conv_encoder_forward.1} parent=1 // pred_check_branch
      %2684 = sbr.rel (0) target = $region37
    $region36: #{conv_encoder_forward.1} parent=1 // pred_region
      _
    $region37: #{conv_encoder_forward.1} parent=1 // pred_fallthru
      _
    %2685 = vsyncpa [#allocation3], 1
    %2686 = vsyncpa [#allocation5], 1

</llo_original>
